<compile_context>
chip_gen: v5e
topology: v5e:2x2
jax: 0.10.0
libtpu: 0.0.40
codegen_flags: <defaults>
</compile_context>

<pallas_src>
import jax
import jax.numpy as jnp
from jax.experimental import pallas as pl
from jax.experimental.pallas import tpu as pltpu

# ---- small config consistent with the ESM2 module structure ----
NUM_LAYERS = 2          # reference default 33 (scaled down)
EMBED_DIM = 32          # reference default 1280 (scaled down)
HEADS = 4               # reference default 20 (scaled down)
VOCAB = 32
PAD_IDX, MASK_IDX, CLS_IDX, EOS_IDX = 0, 1, 2, 3
HEAD_DIM = EMBED_DIM // HEADS
FFN_DIM = 4 * EMBED_DIM
LN_EPS = 1e-5
SQRT_HALF = 0.7071067811865476
NEG_BIG = -1.0e30  # padding-key mask value (exp underflows to exactly 0 in f32)

_PARAMS = pltpu.CompilerParams(
    dimension_semantics=("parallel",),
    vmem_limit_bytes=32 * 1024 * 1024,
)


# -----------------------------------------------------------------------------
# In-kernel helpers (traced into kernel bodies; operate on loaded f32 values)
# -----------------------------------------------------------------------------
def _ln_rows(x, g, b):
    """LayerNorm over the last dim (eps=1e-5, affine), matching ESM1bLayerNorm."""
    mean = jnp.mean(x, axis=-1, keepdims=True)
    var = jnp.mean(jnp.square(x - mean), axis=-1, keepdims=True)
    return (x - mean) * jax.lax.rsqrt(var + LN_EPS) * g + b


def _gelu_exact(x):
    """Exact (erf) GELU, as in esm.modules.gelu."""
    return 0.5 * x * (1.0 + jax.lax.erf(x * SQRT_HALF))


def _apply_rotary(x, cos, sin_signed):
    """x: (T, head_dim) f32.  sin table already carries the rotate_half sign:
    x*cos + rotate_half(x)*sin == x*cos + half_swap(x)*sin_signed."""
    half = HEAD_DIM // 2
    swapped = jnp.concatenate([x[:, half:], x[:, :half]], axis=-1)
    return x * cos + swapped * sin_signed
    # TODO(synk): at production head_dim (64/128) use pltpu.roll on the XLU
    # slot instead of the lane-slice concat.


# -----------------------------------------------------------------------------
# Pallas kernels
# -----------------------------------------------------------------------------
def _layer_kernel(x_ref, kb_ref, cos_ref, sin_ref,
                  ln1g_ref, ln1b_ref, wqkv_ref, bqkv_ref,
                  ow_ref, ob_ref, ln2g_ref, ln2b_ref,
                  w1_ref, b1_ref, w2_ref, b2_ref, o_ref):
    """One full pre-LN transformer layer for one batch element (all T rows)."""
    E, D, H = EMBED_DIM, HEAD_DIM, HEADS
    x = x_ref[...]                                             # (T, E) f32 residual
    xn = _ln_rows(x, ln1g_ref[...], ln1b_ref[...])

    # Fused QKV projection (q columns pre-scaled by head_dim**-0.5).
    qkv = jnp.dot(xn.astype(jnp.bfloat16), wqkv_ref[...],
                  preferred_element_type=jnp.float32) + bqkv_ref[...]   # (T, 3E)

    cos = cos_ref[...]                                         # (T, D)
    sin_s = sin_ref[...]                                       # (T, D), sign-folded
    kb = kb_ref[0]                                             # (1, T) additive bias

    # Per-head attention; ctx never leaves VMEM.
    ctx_heads = []
    for h in range(H):
        q_h = _apply_rotary(qkv[:, h * D:(h + 1) * D], cos, sin_s)          # (T, D)
        k_h = _apply_rotary(qkv[:, E + h * D:E + (h + 1) * D], cos, sin_s)  # (T, D)
        v_h = qkv[:, 2 * E + h * D:2 * E + (h + 1) * D]                     # (T, D)
        s = jnp.einsum("qd,kd->qk",
                       q_h.astype(jnp.bfloat16), k_h.astype(jnp.bfloat16),
                       preferred_element_type=jnp.float32) + kb             # (T, T)
        m = jnp.max(s, axis=-1, keepdims=True)
        p = jnp.exp(s - m)
        probs = p * pl.reciprocal(jnp.sum(p, axis=-1, keepdims=True), approx=True)
        ctx_heads.append(jnp.dot(probs.astype(jnp.bfloat16),
                                 v_h.astype(jnp.bfloat16),
                                 preferred_element_type=jnp.float32))       # (T, D)
    ctx = jnp.concatenate(ctx_heads, axis=-1)                               # (T, E)

    # out-proj + residual
    x1 = x + (jnp.dot(ctx.astype(jnp.bfloat16), ow_ref[...],
                      preferred_element_type=jnp.float32) + ob_ref[...])

    # LN2 + FFN + residual (the (T, 4E) intermediate stays in VMEM)
    ff = _ln_rows(x1, ln2g_ref[...], ln2b_ref[...])
    ff = jnp.dot(ff.astype(jnp.bfloat16), w1_ref[...],
                 preferred_element_type=jnp.float32) + b1_ref[...]
    ff = _gelu_exact(ff)
    y = jnp.dot(ff.astype(jnp.bfloat16), w2_ref[...],
                preferred_element_type=jnp.float32) + b2_ref[...]
    o_ref[...] = (x1 + y).astype(o_ref.dtype)


def _lm_head_kernel(x_ref, lag_ref, lab_ref, dw_ref, db_ref,
                    lg_ref, lb_ref, ew_ref, eb_ref, o_ref):
    """Fused: emb_layer_norm_after + RobertaLMHead (dense, GELU, LN, tied proj).
    The tied projection / output tile is padded to a 128-lane multiple."""
    x = _ln_rows(x_ref[...], lag_ref[...], lab_ref[...])
    h = jnp.dot(x.astype(jnp.bfloat16), dw_ref[...],
                preferred_element_type=jnp.float32) + db_ref[...]
    h = _gelu_exact(h)
    h = _ln_rows(h, lg_ref[...], lb_ref[...])
    logits = jnp.dot(h.astype(jnp.bfloat16), ew_ref[...],
                     preferred_element_type=jnp.float32) + eb_ref[...]
    o_ref[...] = logits.astype(o_ref.dtype)


# -----------------------------------------------------------------------------
# Kernel wrappers
# -----------------------------------------------------------------------------
def _row_tile(m, cap=256):
    """Largest multiple-of-8 row tile dividing m (capped); at tiny m keep >=2
    grid steps so the "parallel" axis can shard across v7x's 2 TensorCores."""
    assert m % 8 == 0
    limit = cap if m >= 2 * cap else max(8, m // 2)
    t = (min(m, limit) // 8) * 8
    while m % t:
        t -= 8
    return t


def transformer_layer(x2, key_bias, cos, sin_signed, p, B, T):
    """x2: (B*T, E) f32 (batch-major rows). Returns (B*T, E) f32."""
    M, E = x2.shape
    F = FFN_DIM
    const = lambda b: (0, 0)
    return pl.pallas_call(
        _layer_kernel,
        out_shape=jax.ShapeDtypeStruct((M, E), jnp.float32),
        grid=(B,),
        in_specs=[
            pl.BlockSpec((T, E), lambda b: (b, 0)),          # x (residual + LN1 in)
            pl.BlockSpec((1, 1, T), lambda b: (b, 0, 0)),    # additive key-pad bias
            pl.BlockSpec((T, HEAD_DIM), const),              # rotary cos
            pl.BlockSpec((T, HEAD_DIM), const),              # rotary sin (signed)
            pl.BlockSpec((1, E), const),                     # ln1_g
            pl.BlockSpec((1, E), const),                     # ln1_b
            pl.BlockSpec((E, 3 * E), const),                 # qkv_w (bf16)
            pl.BlockSpec((1, 3 * E), const),                 # qkv_b
            pl.BlockSpec((E, E), const),                     # o_w (bf16)
            pl.BlockSpec((1, E), const),                     # o_b
            pl.BlockSpec((1, E), const),                     # ln2_g
            pl.BlockSpec((1, E), const),                     # ln2_b
            pl.BlockSpec((E, F), const),                     # fc1_w (bf16)
            pl.BlockSpec((1, F), const),                     # fc1_b
            pl.BlockSpec((F, E), const),                     # fc2_w (bf16)
            pl.BlockSpec((1, E), const),                     # fc2_b
        ],
        out_specs=pl.BlockSpec((T, E), lambda b: (b, 0)),
        compiler_params=_PARAMS,
    )(x2, key_bias, cos, sin_signed,
      p["ln1_g"], p["ln1_b"], p["qkv_w"], p["qkv_b"],
      p["o_w"], p["o_b"], p["ln2_g"], p["ln2_b"],
      p["fc1_w"], p["fc1_b"], p["fc2_w"], p["fc2_b"])


def lm_head(x2, params):
    """Fused emb_layer_norm_after + RobertaLMHead. x2: (M, E) -> (M, V_pad)."""
    M, E = x2.shape
    VP = params["embed_t_pad"].shape[1]
    TM = _row_tile(M)
    const = lambda i: (0, 0)
    return pl.pallas_call(
        _lm_head_kernel,
        out_shape=jax.ShapeDtypeStruct((M, VP), jnp.float32),
        grid=(M // TM,),
        in_specs=[
            pl.BlockSpec((TM, E), lambda i: (i, 0)),         # x
            pl.BlockSpec((1, E), const),                     # ln_after_g
            pl.BlockSpec((1, E), const),                     # ln_after_b
            pl.BlockSpec((E, E), const),                     # lm_dense_w (bf16)
            pl.BlockSpec((1, E), const),                     # lm_dense_b
            pl.BlockSpec((1, E), const),                     # lm_ln_g
            pl.BlockSpec((1, E), const),                     # lm_ln_b
            pl.BlockSpec((E, VP), const),                    # tied embed.T (bf16, padded)
            pl.BlockSpec((1, VP), const),                    # lm_bias (padded)
        ],
        out_specs=pl.BlockSpec((TM, VP), lambda i: (i, 0)),
        compiler_params=_PARAMS,
    )(x2, params["ln_after_g"], params["ln_after_b"],
      params["lm_dense_w"], params["lm_dense_b"],
      params["lm_ln_g"], params["lm_ln_b"],
      params["embed_t_pad"], params["lm_bias_pad"])


# -----------------------------------------------------------------------------
# Plain-JAX glue (embedding lookup, token-dropout rescale, rotary tables)
# -----------------------------------------------------------------------------
def _rotary_tables(T):
    """ESM RotaryEmbedding cos/sin tables; the rotate_half sign is folded into
    the sin table so the kernel only needs a half-swap + 2 mults + add."""
    half = HEAD_DIM // 2
    inv_freq = 1.0 / (10000.0 ** (jnp.arange(0, HEAD_DIM, 2, dtype=jnp.float32)
                                  / HEAD_DIM))
    t = jnp.arange(T, dtype=jnp.float32)
    freqs = jnp.einsum("i,j->ij", t, inv_freq)                 # (T, D/2)
    emb = jnp.concatenate([freqs, freqs], axis=-1)             # (T, D)
    sign = jnp.concatenate([-jnp.ones((half,), jnp.float32),
                            jnp.ones((half,), jnp.float32)])
    return jnp.cos(emb), jnp.sin(emb) * sign[None, :]          # (T, D) each


def esm2_forward(tokens, params):
    """Default ESM2 forward (repr_layers=[], no head weights / contacts) -> logits."""
    B, T = tokens.shape
    assert T % 8 == 0, "seq len must be a multiple of 8 for the (8,128) tiling"
    E = EMBED_DIM

    padding_mask = tokens == PAD_IDX
    mask_tok = tokens == MASK_IDX

    x = params["embed"][tokens]                                # (B, T, E) f32
    x = jnp.where(mask_tok[..., None], 0.0, x)                 # masked_fill_(mask_idx, 0)

    # token dropout rescale
    src_lengths = jnp.sum(~padding_mask, axis=-1).astype(x.dtype)
    mask_ratio_observed = jnp.sum(mask_tok, axis=-1).astype(x.dtype) / src_lengths
    x = x * (1.0 - 0.15 * 0.8) / (1.0 - mask_ratio_observed)[:, None, None]

    # zero padding positions
    x = x * (1.0 - padding_mask[..., None].astype(x.dtype))

    # batch-major (B*T, E) slab; all per-row ops commute with the reference's
    # seq-first transpose, and attention is done per-batch inside the kernel.
    x2 = x.reshape(B * T, E)

    # tiny (B, 1, T) additive key-padding bias, broadcast in-kernel
    # (replaces the old [B*H, T, T] materialized bias).
    key_bias = jnp.where(padding_mask, NEG_BIG, 0.0).astype(jnp.float32)
    key_bias = key_bias.reshape(B, 1, T)

    cos, sin_signed = _rotary_tables(T)                        # hoisted out of the loop

    for p in params["layers"]:
        x2 = transformer_layer(x2, key_bias, cos, sin_signed, p, B, T)

    logits = lm_head(x2, params)                               # (B*T, V_pad)
    return logits[:, :VOCAB].reshape(B, T, VOCAB)              # (B, T, V)


# -----------------------------------------------------------------------------
# Deterministic parameter init (synthetic weights; no checkpoint loading)
# -----------------------------------------------------------------------------
def init_params(key):
    scaling = HEAD_DIM ** -0.5

    def lin_init(k, fan_in, fan_out):
        kw, kb = jax.random.split(k)
        w = jax.random.normal(kw, (fan_in, fan_out), jnp.float32) * 0.05
        b = jax.random.normal(kb, (fan_out,), jnp.float32) * 0.01
        return w, b

    params = {}
    k_emb, key = jax.random.split(key)
    emb = jax.random.normal(k_emb, (VOCAB, EMBED_DIM), jnp.float32) * 0.05
    emb = emb.at[PAD_IDX].set(0.0)        # nn.Embedding padding_idx row is zero
    params["embed"] = emb                 # f32 for the lookup

    # tied LM-head projection: pre-transposed, zero-padded to a 128-lane
    # multiple (lane-dense output; padded columns sliced off outside), bf16.
    vpad = ((VOCAB + 127) // 128) * 128
    embed_t_pad = jnp.zeros((EMBED_DIM, vpad), jnp.float32).at[:, :VOCAB].set(emb.T)
    params["embed_t_pad"] = embed_t_pad.astype(jnp.bfloat16)
    params["lm_bias_pad"] = jnp.zeros((1, vpad), jnp.float32)

    layers = []
    for _ in range(NUM_LAYERS):
        ks = jax.random.split(key, 7)
        key = ks[-1]
        p = {}
        q_w, q_b = lin_init(ks[0], EMBED_DIM, EMBED_DIM)
        k_w, k_b = lin_init(ks[1], EMBED_DIM, EMBED_DIM)
        v_w, v_b = lin_init(ks[2], EMBED_DIM, EMBED_DIM)
        # Fused QKV projection; the attention scaling (head_dim**-0.5) is baked
        # into the q columns/bias (rotary is linear, so the scaling commutes).
        p["qkv_w"] = jnp.concatenate([q_w * scaling, k_w, v_w],
                                     axis=1).astype(jnp.bfloat16)
        p["qkv_b"] = jnp.concatenate([q_b * scaling, k_b, v_b],
                                     axis=0).reshape(1, 3 * EMBED_DIM)
        o_w, o_b = lin_init(ks[3], EMBED_DIM, EMBED_DIM)
        p["o_w"], p["o_b"] = o_w.astype(jnp.bfloat16), o_b.reshape(1, EMBED_DIM)
        f1_w, f1_b = lin_init(ks[4], EMBED_DIM, FFN_DIM)
        p["fc1_w"], p["fc1_b"] = f1_w.astype(jnp.bfloat16), f1_b.reshape(1, FFN_DIM)
        f2_w, f2_b = lin_init(ks[5], FFN_DIM, EMBED_DIM)
        p["fc2_w"], p["fc2_b"] = f2_w.astype(jnp.bfloat16), f2_b.reshape(1, EMBED_DIM)
        p["ln1_g"] = jnp.ones((1, EMBED_DIM), jnp.float32)
        p["ln1_b"] = jnp.zeros((1, EMBED_DIM), jnp.float32)
        p["ln2_g"] = jnp.ones((1, EMBED_DIM), jnp.float32)
        p["ln2_b"] = jnp.zeros((1, EMBED_DIM), jnp.float32)
        layers.append(p)
    params["layers"] = layers

    params["ln_after_g"] = jnp.ones((1, EMBED_DIM), jnp.float32)
    params["ln_after_b"] = jnp.zeros((1, EMBED_DIM), jnp.float32)

    k_dense, key = jax.random.split(key)
    dw, db = lin_init(k_dense, EMBED_DIM, EMBED_DIM)
    params["lm_dense_w"] = dw.astype(jnp.bfloat16)
    params["lm_dense_b"] = db.reshape(1, EMBED_DIM)
    params["lm_ln_g"] = jnp.ones((1, EMBED_DIM), jnp.float32)
    params["lm_ln_b"] = jnp.zeros((1, EMBED_DIM), jnp.float32)
    return params


# TODO(synk): contact_head / attention-weight outputs (need_head_weights /
# return_contacts paths) and the repr_layers dict are not exercised by the
# default forward and are not implemented here.

if __name__ == "__main__":
    key = jax.random.PRNGKey(0)
    params = init_params(key)

    B, T = 2, 8
    tokens = jnp.array(
        [
            [CLS_IDX, 5, 7, MASK_IDX, 9, 11, 13, EOS_IDX],
            [CLS_IDX, 6, 8, 10, MASK_IDX, PAD_IDX, PAD_IDX, PAD_IDX],
        ],
        dtype=jnp.int32,
    )

    forward = jax.jit(esm2_forward)
    logits = jax.block_until_ready(forward(tokens, params))

    assert logits.shape == (B, T, VOCAB), logits.shape
    assert bool(jnp.all(jnp.isfinite(logits)))
    print("KERNEL_OK")
</pallas_src>

<mosaic_0001>
module attributes {stable_mosaic.version = 11 : i64} {
  func.func @_lm_head_kernel(%arg0: i32, %arg1: memref<8x32xf32, #tpu.memory_space<vmem>>, %arg2: memref<1x32xf32, #tpu.memory_space<vmem>>, %arg3: memref<1x32xf32, #tpu.memory_space<vmem>>, %arg4: memref<32x32xbf16, #tpu.memory_space<vmem>>, %arg5: memref<1x32xf32, #tpu.memory_space<vmem>>, %arg6: memref<1x32xf32, #tpu.memory_space<vmem>>, %arg7: memref<1x32xf32, #tpu.memory_space<vmem>>, %arg8: memref<32x128xbf16, #tpu.memory_space<vmem>>, %arg9: memref<1x128xf32, #tpu.memory_space<vmem>>, %arg10: memref<8x128xf32, #tpu.memory_space<vmem>>) attributes {dimension_semantics = [#tpu.dimension_semantics<parallel>], iteration_bounds = array<i64: 2>, scalar_prefetch = 0 : i64, scratch_operands = 0 : i64, tpu.core_type = #tpu.core_type<tc>, window_params = [{transform_indices = @transform_0, window_bounds = array<i64: 8, 32>}, {pipeline_mode = #tpu.pipeline_mode<synchronous>, transform_indices = @transform_1, window_bounds = array<i64: 1, 32>}, {pipeline_mode = #tpu.pipeline_mode<synchronous>, transform_indices = @transform_2, window_bounds = array<i64: 1, 32>}, {pipeline_mode = #tpu.pipeline_mode<synchronous>, transform_indices = @transform_3, window_bounds = array<i64: 32, 32>}, {pipeline_mode = #tpu.pipeline_mode<synchronous>, transform_indices = @transform_4, window_bounds = array<i64: 1, 32>}, {pipeline_mode = #tpu.pipeline_mode<synchronous>, transform_indices = @transform_5, window_bounds = array<i64: 1, 32>}, {pipeline_mode = #tpu.pipeline_mode<synchronous>, transform_indices = @transform_6, window_bounds = array<i64: 1, 32>}, {pipeline_mode = #tpu.pipeline_mode<synchronous>, transform_indices = @transform_7, window_bounds = array<i64: 32, 128>}, {pipeline_mode = #tpu.pipeline_mode<synchronous>, transform_indices = @transform_8, window_bounds = array<i64: 1, 128>}, {transform_indices = @transform_9, window_bounds = array<i64: 8, 128>}]} {
    %c0 = arith.constant 0 : index
    %c0_0 = arith.constant 0 : index
    %0 = vector.load %arg1[%c0, %c0_0] : memref<8x32xf32, #tpu.memory_space<vmem>>, vector<8x32xf32>
    %c0_1 = arith.constant 0 : index
    %c0_2 = arith.constant 0 : index
    %1 = vector.load %arg2[%c0_1, %c0_2] : memref<1x32xf32, #tpu.memory_space<vmem>>, vector<1x32xf32>
    %c0_3 = arith.constant 0 : index
    %c0_4 = arith.constant 0 : index
    %2 = vector.load %arg3[%c0_3, %c0_4] : memref<1x32xf32, #tpu.memory_space<vmem>>, vector<1x32xf32>
    %cst = arith.constant dense<0.000000e+00> : vector<8xf32>
    %3 = vector.multi_reduction <add>, %0, %cst [1] : vector<8x32xf32> to vector<8xf32>
    %4 = vector.shape_cast %3 : vector<8xf32> to vector<8x1xf32>
    %cst_5 = arith.constant 3.200000e+01 : f32
    %5 = vector.broadcast %cst_5 : f32 to vector<8x1xf32>
    %6 = arith.divf %4, %5 : vector<8x1xf32>
    %7 = vector.broadcast %6 : vector<8x1xf32> to vector<8x32xf32>
    %8 = arith.subf %0, %7 : vector<8x32xf32>
    %9 = arith.mulf %8, %8 : vector<8x32xf32>
    %cst_6 = arith.constant dense<0.000000e+00> : vector<8xf32>
    %10 = vector.multi_reduction <add>, %9, %cst_6 [1] : vector<8x32xf32> to vector<8xf32>
    %11 = vector.shape_cast %10 : vector<8xf32> to vector<8x1xf32>
    %cst_7 = arith.constant 3.200000e+01 : f32
    %12 = vector.broadcast %cst_7 : f32 to vector<8x1xf32>
    %13 = arith.divf %11, %12 : vector<8x1xf32>
    %14 = vector.broadcast %6 : vector<8x1xf32> to vector<8x32xf32>
    %15 = arith.subf %0, %14 : vector<8x32xf32>
    %cst_8 = arith.constant 9.99999974E-6 : f32
    %16 = vector.broadcast %cst_8 : f32 to vector<8x1xf32>
    %17 = arith.addf %13, %16 : vector<8x1xf32>
    %18 = math.rsqrt %17 : vector<8x1xf32>
    %19 = vector.broadcast %18 : vector<8x1xf32> to vector<8x32xf32>
    %20 = arith.mulf %15, %19 : vector<8x32xf32>
    %21 = vector.broadcast %1 : vector<1x32xf32> to vector<8x32xf32>
    %22 = arith.mulf %20, %21 : vector<8x32xf32>
    %23 = vector.broadcast %2 : vector<1x32xf32> to vector<8x32xf32>
    %24 = arith.addf %22, %23 : vector<8x32xf32>
    %25 = arith.truncf %24 : vector<8x32xf32> to vector<8x32xbf16>
    %c0_9 = arith.constant 0 : index
    %c0_10 = arith.constant 0 : index
    %26 = vector.load %arg4[%c0_9, %c0_10] : memref<32x32xbf16, #tpu.memory_space<vmem>>, vector<32x32xbf16>
    %cst_11 = arith.constant dense<0.000000e+00> : vector<8x32xf32>
    %27 = tpu.matmul %25, %26, %cst_11 {dimension_numbers = #tpu.dot_dimension_numbers<[1], [0], [0], [1], [0, 0, 1, 1], [], []>} : vector<8x32xbf16>, vector<32x32xbf16>, vector<8x32xf32> -> vector<8x32xf32>
    %c0_12 = arith.constant 0 : index
    %c0_13 = arith.constant 0 : index
    %28 = vector.load %arg5[%c0_12, %c0_13] : memref<1x32xf32, #tpu.memory_space<vmem>>, vector<1x32xf32>
    %29 = vector.broadcast %28 : vector<1x32xf32> to vector<8x32xf32>
    %30 = arith.addf %27, %29 : vector<8x32xf32>
    %cst_14 = arith.constant 5.000000e-01 : f32
    %31 = vector.broadcast %cst_14 : f32 to vector<8x32xf32>
    %32 = arith.mulf %31, %30 : vector<8x32xf32>
    %cst_15 = arith.constant 0.707106769 : f32
    %33 = vector.broadcast %cst_15 : f32 to vector<8x32xf32>
    %34 = arith.mulf %30, %33 : vector<8x32xf32>
    %35 = math.erf %34 : vector<8x32xf32>
    %cst_16 = arith.constant 1.000000e+00 : f32
    %36 = vector.broadcast %cst_16 : f32 to vector<8x32xf32>
    %37 = arith.addf %36, %35 : vector<8x32xf32>
    %38 = arith.mulf %32, %37 : vector<8x32xf32>
    %c0_17 = arith.constant 0 : index
    %c0_18 = arith.constant 0 : index
    %39 = vector.load %arg6[%c0_17, %c0_18] : memref<1x32xf32, #tpu.memory_space<vmem>>, vector<1x32xf32>
    %c0_19 = arith.constant 0 : index
    %c0_20 = arith.constant 0 : index
    %40 = vector.load %arg7[%c0_19, %c0_20] : memref<1x32xf32, #tpu.memory_space<vmem>>, vector<1x32xf32>
    %cst_21 = arith.constant dense<0.000000e+00> : vector<8xf32>
    %41 = vector.multi_reduction <add>, %38, %cst_21 [1] : vector<8x32xf32> to vector<8xf32>
    %42 = vector.shape_cast %41 : vector<8xf32> to vector<8x1xf32>
    %cst_22 = arith.constant 3.200000e+01 : f32
    %43 = vector.broadcast %cst_22 : f32 to vector<8x1xf32>
    %44 = arith.divf %42, %43 : vector<8x1xf32>
    %45 = vector.broadcast %44 : vector<8x1xf32> to vector<8x32xf32>
    %46 = arith.subf %38, %45 : vector<8x32xf32>
    %47 = arith.mulf %46, %46 : vector<8x32xf32>
    %cst_23 = arith.constant dense<0.000000e+00> : vector<8xf32>
    %48 = vector.multi_reduction <add>, %47, %cst_23 [1] : vector<8x32xf32> to vector<8xf32>
    %49 = vector.shape_cast %48 : vector<8xf32> to vector<8x1xf32>
    %cst_24 = arith.constant 3.200000e+01 : f32
    %50 = vector.broadcast %cst_24 : f32 to vector<8x1xf32>
    %51 = arith.divf %49, %50 : vector<8x1xf32>
    %52 = vector.broadcast %44 : vector<8x1xf32> to vector<8x32xf32>
    %53 = arith.subf %38, %52 : vector<8x32xf32>
    %cst_25 = arith.constant 9.99999974E-6 : f32
    %54 = vector.broadcast %cst_25 : f32 to vector<8x1xf32>
    %55 = arith.addf %51, %54 : vector<8x1xf32>
    %56 = math.rsqrt %55 : vector<8x1xf32>
    %57 = vector.broadcast %56 : vector<8x1xf32> to vector<8x32xf32>
    %58 = arith.mulf %53, %57 : vector<8x32xf32>
    %59 = vector.broadcast %39 : vector<1x32xf32> to vector<8x32xf32>
    %60 = arith.mulf %58, %59 : vector<8x32xf32>
    %61 = vector.broadcast %40 : vector<1x32xf32> to vector<8x32xf32>
    %62 = arith.addf %60, %61 : vector<8x32xf32>
    %63 = arith.truncf %62 : vector<8x32xf32> to vector<8x32xbf16>
    %c0_26 = arith.constant 0 : index
    %c0_27 = arith.constant 0 : index
    %64 = vector.load %arg8[%c0_26, %c0_27] : memref<32x128xbf16, #tpu.memory_space<vmem>>, vector<32x128xbf16>
    %cst_28 = arith.constant dense<0.000000e+00> : vector<8x128xf32>
    %65 = tpu.matmul %63, %64, %cst_28 {dimension_numbers = #tpu.dot_dimension_numbers<[1], [0], [0], [1], [0, 0, 1, 1], [], []>} : vector<8x32xbf16>, vector<32x128xbf16>, vector<8x128xf32> -> vector<8x128xf32>
    %c0_29 = arith.constant 0 : index
    %c0_30 = arith.constant 0 : index
    %66 = vector.load %arg9[%c0_29, %c0_30] : memref<1x128xf32, #tpu.memory_space<vmem>>, vector<1x128xf32>
    %67 = vector.broadcast %66 : vector<1x128xf32> to vector<8x128xf32>
    %68 = arith.addf %65, %67 : vector<8x128xf32>
    %c0_31 = arith.constant 0 : index
    %c0_32 = arith.constant 0 : index
    %69 = vector.load %arg10[%c0_31, %c0_32] : memref<8x128xf32, #tpu.memory_space<vmem>>, vector<8x128xf32>
    tpu.vector_store %arg10[%c0_31, %c0_32], %68 {strides = array<i32>} : memref<8x128xf32, #tpu.memory_space<vmem>>, vector<8x128xf32>,
    return
  }
  func.func @transform_0(%arg0: i32) -> (i32, i32) {
    %c0_i32 = arith.constant 0 : i32
    %c0_i32_0 = arith.constant 0 : i32
    return %arg0, %c0_i32 : i32, i32
  }
  func.func @transform_1(%arg0: i32) -> (i32, i32) {
    %c0_i32 = arith.constant 0 : i32
    %c0_i32_0 = arith.constant 0 : i32
    %c0_i32_1 = arith.constant 0 : i32
    return %c0_i32, %c0_i32_0 : i32, i32
  }
  func.func @transform_2(%arg0: i32) -> (i32, i32) {
    %c0_i32 = arith.constant 0 : i32
    %c0_i32_0 = arith.constant 0 : i32
    %c0_i32_1 = arith.constant 0 : i32
    return %c0_i32, %c0_i32_0 : i32, i32
  }
  func.func @transform_3(%arg0: i32) -> (i32, i32) {
    %c0_i32 = arith.constant 0 : i32
    %c0_i32_0 = arith.constant 0 : i32
    %c0_i32_1 = arith.constant 0 : i32
    return %c0_i32, %c0_i32_0 : i32, i32
  }
  func.func @transform_4(%arg0: i32) -> (i32, i32) {
    %c0_i32 = arith.constant 0 : i32
    %c0_i32_0 = arith.constant 0 : i32
    %c0_i32_1 = arith.constant 0 : i32
    return %c0_i32, %c0_i32_0 : i32, i32
  }
  func.func @transform_5(%arg0: i32) -> (i32, i32) {
    %c0_i32 = arith.constant 0 : i32
    %c0_i32_0 = arith.constant 0 : i32
    %c0_i32_1 = arith.constant 0 : i32
    return %c0_i32, %c0_i32_0 : i32, i32
  }
  func.func @transform_6(%arg0: i32) -> (i32, i32) {
    %c0_i32 = arith.constant 0 : i32
    %c0_i32_0 = arith.constant 0 : i32
    %c0_i32_1 = arith.constant 0 : i32
    return %c0_i32, %c0_i32_0 : i32, i32
  }
  func.func @transform_7(%arg0: i32) -> (i32, i32) {
    %c0_i32 = arith.constant 0 : i32
    %c0_i32_0 = arith.constant 0 : i32
    %c0_i32_1 = arith.constant 0 : i32
    return %c0_i32, %c0_i32_0 : i32, i32
  }
  func.func @transform_8(%arg0: i32) -> (i32, i32) {
    %c0_i32 = arith.constant 0 : i32
    %c0_i32_0 = arith.constant 0 : i32
    %c0_i32_1 = arith.constant 0 : i32
    return %c0_i32, %c0_i32_0 : i32, i32
  }
  func.func @transform_9(%arg0: i32) -> (i32, i32) {
    %c0_i32 = arith.constant 0 : i32
    %c0_i32_0 = arith.constant 0 : i32
    return %arg0, %c0_i32 : i32, i32
  }
}

module attributes {stable_mosaic.version = 11 : i64} {
  func.func @_layer_kernel(%arg0: i32, %arg1: memref<8x32xf32, #tpu.memory_space<vmem>>, %arg2: memref<1x1x8xf32, #tpu.memory_space<vmem>>, %arg3: memref<8x8xf32, #tpu.memory_space<vmem>>, %arg4: memref<8x8xf32, #tpu.memory_space<vmem>>, %arg5: memref<1x32xf32, #tpu.memory_space<vmem>>, %arg6: memref<1x32xf32, #tpu.memory_space<vmem>>, %arg7: memref<32x96xbf16, #tpu.memory_space<vmem>>, %arg8: memref<1x96xf32, #tpu.memory_space<vmem>>, %arg9: memref<32x32xbf16, #tpu.memory_space<vmem>>, %arg10: memref<1x32xf32, #tpu.memory_space<vmem>>, %arg11: memref<1x32xf32, #tpu.memory_space<vmem>>, %arg12: memref<1x32xf32, #tpu.memory_space<vmem>>, %arg13: memref<32x128xbf16, #tpu.memory_space<vmem>>, %arg14: memref<1x128xf32, #tpu.memory_space<vmem>>, %arg15: memref<128x32xbf16, #tpu.memory_space<vmem>>, %arg16: memref<1x32xf32, #tpu.memory_space<vmem>>, %arg17: memref<8x32xf32, #tpu.memory_space<vmem>>) attributes {dimension_semantics = [#tpu.dimension_semantics<parallel>], iteration_bounds = array<i64: 2>, scalar_prefetch = 0 : i64, scratch_operands = 0 : i64, tpu.core_type = #tpu.core_type<tc>, window_params = [{transform_indices = @transform_0, window_bounds = array<i64: 8, 32>}, {transform_indices = @transform_1, window_bounds = array<i64: 1, 1, 8>}, {pipeline_mode = #tpu.pipeline_mode<synchronous>, transform_indices = @transform_2, window_bounds = array<i64: 8, 8>}, {pipeline_mode = #tpu.pipeline_mode<synchronous>, transform_indices = @transform_3, window_bounds = array<i64: 8, 8>}, {pipeline_mode = #tpu.pipeline_mode<synchronous>, transform_indices = @transform_4, window_bounds = array<i64: 1, 32>}, {pipeline_mode = #tpu.pipeline_mode<synchronous>, transform_indices = @transform_5, window_bounds = array<i64: 1, 32>}, {pipeline_mode = #tpu.pipeline_mode<synchronous>, transform_indices = @transform_6, window_bounds = array<i64: 32, 96>}, {pipeline_mode = #tpu.pipeline_mode<synchronous>, transform_indices = @transform_7, window_bounds = array<i64: 1, 96>}, {pipeline_mode = #tpu.pipeline_mode<synchronous>, transform_indices = @transform_8, window_bounds = array<i64: 32, 32>}, {pipeline_mode = #tpu.pipeline_mode<synchronous>, transform_indices = @transform_9, window_bounds = array<i64: 1, 32>}, {pipeline_mode = #tpu.pipeline_mode<synchronous>, transform_indices = @transform_10, window_bounds = array<i64: 1, 32>}, {pipeline_mode = #tpu.pipeline_mode<synchronous>, transform_indices = @transform_11, window_bounds = array<i64: 1, 32>}, {pipeline_mode = #tpu.pipeline_mode<synchronous>, transform_indices = @transform_12, window_bounds = array<i64: 32, 128>}, {pipeline_mode = #tpu.pipeline_mode<synchronous>, transform_indices = @transform_13, window_bounds = array<i64: 1, 128>}, {pipeline_mode = #tpu.pipeline_mode<synchronous>, transform_indices = @transform_14, window_bounds = array<i64: 128, 32>}, {pipeline_mode = #tpu.pipeline_mode<synchronous>, transform_indices = @transform_15, window_bounds = array<i64: 1, 32>}, {transform_indices = @transform_16, window_bounds = array<i64: 8, 32>}]} {
    %c0 = arith.constant 0 : index
    %c0_0 = arith.constant 0 : index
    %0 = vector.load %arg1[%c0, %c0_0] : memref<8x32xf32, #tpu.memory_space<vmem>>, vector<8x32xf32>
    %c0_1 = arith.constant 0 : index
    %c0_2 = arith.constant 0 : index
    %1 = vector.load %arg5[%c0_1, %c0_2] : memref<1x32xf32, #tpu.memory_space<vmem>>, vector<1x32xf32>
    %c0_3 = arith.constant 0 : index
    %c0_4 = arith.constant 0 : index
    %2 = vector.load %arg6[%c0_3, %c0_4] : memref<1x32xf32, #tpu.memory_space<vmem>>, vector<1x32xf32>
    %cst = arith.constant dense<0.000000e+00> : vector<8xf32>
    %3 = vector.multi_reduction <add>, %0, %cst [1] : vector<8x32xf32> to vector<8xf32>
    %4 = vector.shape_cast %3 : vector<8xf32> to vector<8x1xf32>
    %cst_5 = arith.constant 3.200000e+01 : f32
    %5 = vector.broadcast %cst_5 : f32 to vector<8x1xf32>
    %6 = arith.divf %4, %5 : vector<8x1xf32>
    %7 = vector.broadcast %6 : vector<8x1xf32> to vector<8x32xf32>
    %8 = arith.subf %0, %7 : vector<8x32xf32>
    %9 = arith.mulf %8, %8 : vector<8x32xf32>
    %cst_6 = arith.constant dense<0.000000e+00> : vector<8xf32>
    %10 = vector.multi_reduction <add>, %9, %cst_6 [1] : vector<8x32xf32> to vector<8xf32>
    %11 = vector.shape_cast %10 : vector<8xf32> to vector<8x1xf32>
    %cst_7 = arith.constant 3.200000e+01 : f32
    %12 = vector.broadcast %cst_7 : f32 to vector<8x1xf32>
    %13 = arith.divf %11, %12 : vector<8x1xf32>
    %14 = vector.broadcast %6 : vector<8x1xf32> to vector<8x32xf32>
    %15 = arith.subf %0, %14 : vector<8x32xf32>
    %cst_8 = arith.constant 9.99999974E-6 : f32
    %16 = vector.broadcast %cst_8 : f32 to vector<8x1xf32>
    %17 = arith.addf %13, %16 : vector<8x1xf32>
    %18 = math.rsqrt %17 : vector<8x1xf32>
    %19 = vector.broadcast %18 : vector<8x1xf32> to vector<8x32xf32>
    %20 = arith.mulf %15, %19 : vector<8x32xf32>
    %21 = vector.broadcast %1 : vector<1x32xf32> to vector<8x32xf32>
    %22 = arith.mulf %20, %21 : vector<8x32xf32>
    %23 = vector.broadcast %2 : vector<1x32xf32> to vector<8x32xf32>
    %24 = arith.addf %22, %23 : vector<8x32xf32>
    %25 = arith.truncf %24 : vector<8x32xf32> to vector<8x32xbf16>
    %c0_9 = arith.constant 0 : index
    %c0_10 = arith.constant 0 : index
    %26 = vector.load %arg7[%c0_9, %c0_10] : memref<32x96xbf16, #tpu.memory_space<vmem>>, vector<32x96xbf16>
    %cst_11 = arith.constant dense<0.000000e+00> : vector<8x96xf32>
    %27 = tpu.matmul %25, %26, %cst_11 {dimension_numbers = #tpu.dot_dimension_numbers<[1], [0], [0], [1], [0, 0, 1, 1], [], []>} : vector<8x32xbf16>, vector<32x96xbf16>, vector<8x96xf32> -> vector<8x96xf32>
    %c0_12 = arith.constant 0 : index
    %c0_13 = arith.constant 0 : index
    %28 = vector.load %arg8[%c0_12, %c0_13] : memref<1x96xf32, #tpu.memory_space<vmem>>, vector<1x96xf32>
    %29 = vector.broadcast %28 : vector<1x96xf32> to vector<8x96xf32>
    %30 = arith.addf %27, %29 : vector<8x96xf32>
    %c0_14 = arith.constant 0 : index
    %c0_15 = arith.constant 0 : index
    %31 = vector.load %arg3[%c0_14, %c0_15] : memref<8x8xf32, #tpu.memory_space<vmem>>, vector<8x8xf32>
    %c0_16 = arith.constant 0 : index
    %c0_17 = arith.constant 0 : index
    %32 = vector.load %arg4[%c0_16, %c0_17] : memref<8x8xf32, #tpu.memory_space<vmem>>, vector<8x8xf32>
    %c0_18 = arith.constant 0 : index
    %c0_19 = arith.constant 0 : index
    %c0_20 = arith.constant 0 : index
    %33 = vector.load %arg2[%c0_18, %c0_19, %c0_20] : memref<1x1x8xf32, #tpu.memory_space<vmem>>, vector<1x1x8xf32>
    %34 = vector.shape_cast %33 : vector<1x1x8xf32> to vector<1x8xf32>
    %35 = vector.extract_strided_slice %30 {offsets = [0, 0], sizes = [8, 8], strides = [1, 1]} : vector<8x96xf32> to vector<8x8xf32>
    %36 = vector.extract_strided_slice %35 {offsets = [0, 4], sizes = [8, 4], strides = [1, 1]} : vector<8x8xf32> to vector<8x4xf32>
    %37 = vector.extract_strided_slice %35 {offsets = [0, 0], sizes = [8, 4], strides = [1, 1]} : vector<8x8xf32> to vector<8x4xf32>
    %38 = tpu.concatenate %36, %37 in 1 : vector<8x4xf32>, vector<8x4xf32> -> vector<8x8xf32>
    %39 = arith.mulf %35, %31 : vector<8x8xf32>
    %40 = arith.mulf %38, %32 : vector<8x8xf32>
    %41 = arith.addf %39, %40 : vector<8x8xf32>
    %42 = vector.extract_strided_slice %30 {offsets = [0, 32], sizes = [8, 8], strides = [1, 1]} : vector<8x96xf32> to vector<8x8xf32>
    %43 = vector.extract_strided_slice %42 {offsets = [0, 4], sizes = [8, 4], strides = [1, 1]} : vector<8x8xf32> to vector<8x4xf32>
    %44 = vector.extract_strided_slice %42 {offsets = [0, 0], sizes = [8, 4], strides = [1, 1]} : vector<8x8xf32> to vector<8x4xf32>
    %45 = tpu.concatenate %43, %44 in 1 : vector<8x4xf32>, vector<8x4xf32> -> vector<8x8xf32>
    %46 = arith.mulf %42, %31 : vector<8x8xf32>
    %47 = arith.mulf %45, %32 : vector<8x8xf32>
    %48 = arith.addf %46, %47 : vector<8x8xf32>
    %49 = vector.extract_strided_slice %30 {offsets = [0, 64], sizes = [8, 8], strides = [1, 1]} : vector<8x96xf32> to vector<8x8xf32>
    %50 = arith.truncf %41 : vector<8x8xf32> to vector<8x8xbf16>
    %51 = arith.truncf %48 : vector<8x8xf32> to vector<8x8xbf16>
    "tpu.trace_start"() <{level = 10 : i32, message = "qd,kd->qk"}> : () -> ()
    %cst_21 = arith.constant dense<0.000000e+00> : vector<8x8xf32>
    %52 = tpu.matmul %50, %51, %cst_21 {dimension_numbers = #tpu.dot_dimension_numbers<[1], [1], [0], [0], [0, 0, 1, 0], [], []>} : vector<8x8xbf16>, vector<8x8xbf16>, vector<8x8xf32> -> vector<8x8xf32>
    "tpu.trace_stop"() : () -> ()
    %53 = vector.broadcast %34 : vector<1x8xf32> to vector<8x8xf32>
    %54 = arith.addf %52, %53 : vector<8x8xf32>
    %cst_22 = arith.constant dense<0xFF800000> : vector<8xf32>
    %55 = vector.multi_reduction <maximumf>, %54, %cst_22 [1] : vector<8x8xf32> to vector<8xf32>
    %56 = vector.shape_cast %55 : vector<8xf32> to vector<8x1xf32>
    %57 = vector.broadcast %56 : vector<8x1xf32> to vector<8x8xf32>
    %58 = arith.subf %54, %57 : vector<8x8xf32>
    %59 = math.exp %58 : vector<8x8xf32>
    %cst_23 = arith.constant dense<0.000000e+00> : vector<8xf32>
    %60 = vector.multi_reduction <add>, %59, %cst_23 [1] : vector<8x8xf32> to vector<8xf32>
    %61 = vector.shape_cast %60 : vector<8xf32> to vector<8x1xf32>
    %62 = tpu.reciprocal %61 {approx = true} : vector<8x1xf32> -> vector<8x1xf32>
    %63 = vector.broadcast %62 : vector<8x1xf32> to vector<8x8xf32>
    %64 = arith.mulf %59, %63 : vector<8x8xf32>
    %65 = arith.truncf %64 : vector<8x8xf32> to vector<8x8xbf16>
    %66 = arith.truncf %49 : vector<8x8xf32> to vector<8x8xbf16>
    %cst_24 = arith.constant dense<0.000000e+00> : vector<8x8xf32>
    %67 = tpu.matmul %65, %66, %cst_24 {dimension_numbers = #tpu.dot_dimension_numbers<[1], [0], [0], [1], [0, 0, 1, 1], [], []>} : vector<8x8xbf16>, vector<8x8xbf16>, vector<8x8xf32> -> vector<8x8xf32>
    %68 = vector.extract_strided_slice %30 {offsets = [0, 8], sizes = [8, 8], strides = [1, 1]} : vector<8x96xf32> to vector<8x8xf32>
    %69 = vector.extract_strided_slice %68 {offsets = [0, 4], sizes = [8, 4], strides = [1, 1]} : vector<8x8xf32> to vector<8x4xf32>
    %70 = vector.extract_strided_slice %68 {offsets = [0, 0], sizes = [8, 4], strides = [1, 1]} : vector<8x8xf32> to vector<8x4xf32>
    %71 = tpu.concatenate %69, %70 in 1 : vector<8x4xf32>, vector<8x4xf32> -> vector<8x8xf32>
    %72 = arith.mulf %68, %31 : vector<8x8xf32>
    %73 = arith.mulf %71, %32 : vector<8x8xf32>
    %74 = arith.addf %72, %73 : vector<8x8xf32>
    %75 = vector.extract_strided_slice %30 {offsets = [0, 40], sizes = [8, 8], strides = [1, 1]} : vector<8x96xf32> to vector<8x8xf32>
    %76 = vector.extract_strided_slice %75 {offsets = [0, 4], sizes = [8, 4], strides = [1, 1]} : vector<8x8xf32> to vector<8x4xf32>
    %77 = vector.extract_strided_slice %75 {offsets = [0, 0], sizes = [8, 4], strides = [1, 1]} : vector<8x8xf32> to vector<8x4xf32>
    %78 = tpu.concatenate %76, %77 in 1 : vector<8x4xf32>, vector<8x4xf32> -> vector<8x8xf32>
    %79 = arith.mulf %75, %31 : vector<8x8xf32>
    %80 = arith.mulf %78, %32 : vector<8x8xf32>
    %81 = arith.addf %79, %80 : vector<8x8xf32>
    %82 = vector.extract_strided_slice %30 {offsets = [0, 72], sizes = [8, 8], strides = [1, 1]} : vector<8x96xf32> to vector<8x8xf32>
    %83 = arith.truncf %74 : vector<8x8xf32> to vector<8x8xbf16>
    %84 = arith.truncf %81 : vector<8x8xf32> to vector<8x8xbf16>
    "tpu.trace_start"() <{level = 10 : i32, message = "qd,kd->qk"}> : () -> ()
    %cst_25 = arith.constant dense<0.000000e+00> : vector<8x8xf32>
    %85 = tpu.matmul %83, %84, %cst_25 {dimension_numbers = #tpu.dot_dimension_numbers<[1], [1], [0], [0], [0, 0, 1, 0], [], []>} : vector<8x8xbf16>, vector<8x8xbf16>, vector<8x8xf32> -> vector<8x8xf32>
    "tpu.trace_stop"() : () -> ()
    %86 = vector.broadcast %34 : vector<1x8xf32> to vector<8x8xf32>
    %87 = arith.addf %85, %86 : vector<8x8xf32>
    %cst_26 = arith.constant dense<0xFF800000> : vector<8xf32>
    %88 = vector.multi_reduction <maximumf>, %87, %cst_26 [1] : vector<8x8xf32> to vector<8xf32>
    %89 = vector.shape_cast %88 : vector<8xf32> to vector<8x1xf32>
    %90 = vector.broadcast %89 : vector<8x1xf32> to vector<8x8xf32>
    %91 = arith.subf %87, %90 : vector<8x8xf32>
    %92 = math.exp %91 : vector<8x8xf32>
    %cst_27 = arith.constant dense<0.000000e+00> : vector<8xf32>
    %93 = vector.multi_reduction <add>, %92, %cst_27 [1] : vector<8x8xf32> to vector<8xf32>
    %94 = vector.shape_cast %93 : vector<8xf32> to vector<8x1xf32>
    %95 = tpu.reciprocal %94 {approx = true} : vector<8x1xf32> -> vector<8x1xf32>
    %96 = vector.broadcast %95 : vector<8x1xf32> to vector<8x8xf32>
    %97 = arith.mulf %92, %96 : vector<8x8xf32>
    %98 = arith.truncf %97 : vector<8x8xf32> to vector<8x8xbf16>
    %99 = arith.truncf %82 : vector<8x8xf32> to vector<8x8xbf16>
    %cst_28 = arith.constant dense<0.000000e+00> : vector<8x8xf32>
    %100 = tpu.matmul %98, %99, %cst_28 {dimension_numbers = #tpu.dot_dimension_numbers<[1], [0], [0], [1], [0, 0, 1, 1], [], []>} : vector<8x8xbf16>, vector<8x8xbf16>, vector<8x8xf32> -> vector<8x8xf32>
    %101 = vector.extract_strided_slice %30 {offsets = [0, 16], sizes = [8, 8], strides = [1, 1]} : vector<8x96xf32> to vector<8x8xf32>
    %102 = vector.extract_strided_slice %101 {offsets = [0, 4], sizes = [8, 4], strides = [1, 1]} : vector<8x8xf32> to vector<8x4xf32>
    %103 = vector.extract_strided_slice %101 {offsets = [0, 0], sizes = [8, 4], strides = [1, 1]} : vector<8x8xf32> to vector<8x4xf32>
    %104 = tpu.concatenate %102, %103 in 1 : vector<8x4xf32>, vector<8x4xf32> -> vector<8x8xf32>
    %105 = arith.mulf %101, %31 : vector<8x8xf32>
    %106 = arith.mulf %104, %32 : vector<8x8xf32>
    %107 = arith.addf %105, %106 : vector<8x8xf32>
    %108 = vector.extract_strided_slice %30 {offsets = [0, 48], sizes = [8, 8], strides = [1, 1]} : vector<8x96xf32> to vector<8x8xf32>
    %109 = vector.extract_strided_slice %108 {offsets = [0, 4], sizes = [8, 4], strides = [1, 1]} : vector<8x8xf32> to vector<8x4xf32>
    %110 = vector.extract_strided_slice %108 {offsets = [0, 0], sizes = [8, 4], strides = [1, 1]} : vector<8x8xf32> to vector<8x4xf32>
    %111 = tpu.concatenate %109, %110 in 1 : vector<8x4xf32>, vector<8x4xf32> -> vector<8x8xf32>
    %112 = arith.mulf %108, %31 : vector<8x8xf32>
    %113 = arith.mulf %111, %32 : vector<8x8xf32>
    %114 = arith.addf %112, %113 : vector<8x8xf32>
    %115 = vector.extract_strided_slice %30 {offsets = [0, 80], sizes = [8, 8], strides = [1, 1]} : vector<8x96xf32> to vector<8x8xf32>
    %116 = arith.truncf %107 : vector<8x8xf32> to vector<8x8xbf16>
    %117 = arith.truncf %114 : vector<8x8xf32> to vector<8x8xbf16>
    "tpu.trace_start"() <{level = 10 : i32, message = "qd,kd->qk"}> : () -> ()
    %cst_29 = arith.constant dense<0.000000e+00> : vector<8x8xf32>
    %118 = tpu.matmul %116, %117, %cst_29 {dimension_numbers = #tpu.dot_dimension_numbers<[1], [1], [0], [0], [0, 0, 1, 0], [], []>} : vector<8x8xbf16>, vector<8x8xbf16>, vector<8x8xf32> -> vector<8x8xf32>
    "tpu.trace_stop"() : () -> ()
    %119 = vector.broadcast %34 : vector<1x8xf32> to vector<8x8xf32>
    %120 = arith.addf %118, %119 : vector<8x8xf32>
    %cst_30 = arith.constant dense<0xFF800000> : vector<8xf32>
    %121 = vector.multi_reduction <maximumf>, %120, %cst_30 [1] : vector<8x8xf32> to vector<8xf32>
    %122 = vector.shape_cast %121 : vector<8xf32> to vector<8x1xf32>
    %123 = vector.broadcast %122 : vector<8x1xf32> to vector<8x8xf32>
    %124 = arith.subf %120, %123 : vector<8x8xf32>
    %125 = math.exp %124 : vector<8x8xf32>
    %cst_31 = arith.constant dense<0.000000e+00> : vector<8xf32>
    %126 = vector.multi_reduction <add>, %125, %cst_31 [1] : vector<8x8xf32> to vector<8xf32>
    %127 = vector.shape_cast %126 : vector<8xf32> to vector<8x1xf32>
    %128 = tpu.reciprocal %127 {approx = true} : vector<8x1xf32> -> vector<8x1xf32>
    %129 = vector.broadcast %128 : vector<8x1xf32> to vector<8x8xf32>
    %130 = arith.mulf %125, %129 : vector<8x8xf32>
    %131 = arith.truncf %130 : vector<8x8xf32> to vector<8x8xbf16>
    %132 = arith.truncf %115 : vector<8x8xf32> to vector<8x8xbf16>
    %cst_32 = arith.constant dense<0.000000e+00> : vector<8x8xf32>
    %133 = tpu.matmul %131, %132, %cst_32 {dimension_numbers = #tpu.dot_dimension_numbers<[1], [0], [0], [1], [0, 0, 1, 1], [], []>} : vector<8x8xbf16>, vector<8x8xbf16>, vector<8x8xf32> -> vector<8x8xf32>
    %134 = vector.extract_strided_slice %30 {offsets = [0, 24], sizes = [8, 8], strides = [1, 1]} : vector<8x96xf32> to vector<8x8xf32>
    %135 = vector.extract_strided_slice %134 {offsets = [0, 4], sizes = [8, 4], strides = [1, 1]} : vector<8x8xf32> to vector<8x4xf32>
    %136 = vector.extract_strided_slice %134 {offsets = [0, 0], sizes = [8, 4], strides = [1, 1]} : vector<8x8xf32> to vector<8x4xf32>
    %137 = tpu.concatenate %135, %136 in 1 : vector<8x4xf32>, vector<8x4xf32> -> vector<8x8xf32>
    %138 = arith.mulf %134, %31 : vector<8x8xf32>
    %139 = arith.mulf %137, %32 : vector<8x8xf32>
    %140 = arith.addf %138, %139 : vector<8x8xf32>
    %141 = vector.extract_strided_slice %30 {offsets = [0, 56], sizes = [8, 8], strides = [1, 1]} : vector<8x96xf32> to vector<8x8xf32>
    %142 = vector.extract_strided_slice %141 {offsets = [0, 4], sizes = [8, 4], strides = [1, 1]} : vector<8x8xf32> to vector<8x4xf32>
    %143 = vector.extract_strided_slice %141 {offsets = [0, 0], sizes = [8, 4], strides = [1, 1]} : vector<8x8xf32> to vector<8x4xf32>
    %144 = tpu.concatenate %142, %143 in 1 : vector<8x4xf32>, vector<8x4xf32> -> vector<8x8xf32>
    %145 = arith.mulf %141, %31 : vector<8x8xf32>
    %146 = arith.mulf %144, %32 : vector<8x8xf32>
    %147 = arith.addf %145, %146 : vector<8x8xf32>
    %148 = vector.extract_strided_slice %30 {offsets = [0, 88], sizes = [8, 8], strides = [1, 1]} : vector<8x96xf32> to vector<8x8xf32>
    %149 = arith.truncf %140 : vector<8x8xf32> to vector<8x8xbf16>
    %150 = arith.truncf %147 : vector<8x8xf32> to vector<8x8xbf16>
    "tpu.trace_start"() <{level = 10 : i32, message = "qd,kd->qk"}> : () -> ()
    %cst_33 = arith.constant dense<0.000000e+00> : vector<8x8xf32>
    %151 = tpu.matmul %149, %150, %cst_33 {dimension_numbers = #tpu.dot_dimension_numbers<[1], [1], [0], [0], [0, 0, 1, 0], [], []>} : vector<8x8xbf16>, vector<8x8xbf16>, vector<8x8xf32> -> vector<8x8xf32>
    "tpu.trace_stop"() : () -> ()
    %152 = vector.broadcast %34 : vector<1x8xf32> to vector<8x8xf32>
    %153 = arith.addf %151, %152 : vector<8x8xf32>
    %cst_34 = arith.constant dense<0xFF800000> : vector<8xf32>
    %154 = vector.multi_reduction <maximumf>, %153, %cst_34 [1] : vector<8x8xf32> to vector<8xf32>
    %155 = vector.shape_cast %154 : vector<8xf32> to vector<8x1xf32>
    %156 = vector.broadcast %155 : vector<8x1xf32> to vector<8x8xf32>
    %157 = arith.subf %153, %156 : vector<8x8xf32>
    %158 = math.exp %157 : vector<8x8xf32>
    %cst_35 = arith.constant dense<0.000000e+00> : vector<8xf32>
    %159 = vector.multi_reduction <add>, %158, %cst_35 [1] : vector<8x8xf32> to vector<8xf32>
    %160 = vector.shape_cast %159 : vector<8xf32> to vector<8x1xf32>
    %161 = tpu.reciprocal %160 {approx = true} : vector<8x1xf32> -> vector<8x1xf32>
    %162 = vector.broadcast %161 : vector<8x1xf32> to vector<8x8xf32>
    %163 = arith.mulf %158, %162 : vector<8x8xf32>
    %164 = arith.truncf %163 : vector<8x8xf32> to vector<8x8xbf16>
    %165 = arith.truncf %148 : vector<8x8xf32> to vector<8x8xbf16>
    %cst_36 = arith.constant dense<0.000000e+00> : vector<8x8xf32>
    %166 = tpu.matmul %164, %165, %cst_36 {dimension_numbers = #tpu.dot_dimension_numbers<[1], [0], [0], [1], [0, 0, 1, 1], [], []>} : vector<8x8xbf16>, vector<8x8xbf16>, vector<8x8xf32> -> vector<8x8xf32>
    %167 = tpu.concatenate %67, %100, %133, %166 in 1 : vector<8x8xf32>, vector<8x8xf32>, vector<8x8xf32>, vector<8x8xf32> -> vector<8x32xf32>
    %168 = arith.truncf %167 : vector<8x32xf32> to vector<8x32xbf16>
    %c0_37 = arith.constant 0 : index
    %c0_38 = arith.constant 0 : index
    %169 = vector.load %arg9[%c0_37, %c0_38] : memref<32x32xbf16, #tpu.memory_space<vmem>>, vector<32x32xbf16>
    %cst_39 = arith.constant dense<0.000000e+00> : vector<8x32xf32>
    %170 = tpu.matmul %168, %169, %cst_39 {dimension_numbers = #tpu.dot_dimension_numbers<[1], [0], [0], [1], [0, 0, 1, 1], [], []>} : vector<8x32xbf16>, vector<32x32xbf16>, vector<8x32xf32> -> vector<8x32xf32>
    %c0_40 = arith.constant 0 : index
    %c0_41 = arith.constant 0 : index
    %171 = vector.load %arg10[%c0_40, %c0_41] : memref<1x32xf32, #tpu.memory_space<vmem>>, vector<1x32xf32>
    %172 = vector.broadcast %171 : vector<1x32xf32> to vector<8x32xf32>
    %173 = arith.addf %170, %172 : vector<8x32xf32>
    %174 = arith.addf %0, %173 : vector<8x32xf32>
    %c0_42 = arith.constant 0 : index
    %c0_43 = arith.constant 0 : index
    %175 = vector.load %arg11[%c0_42, %c0_43] : memref<1x32xf32, #tpu.memory_space<vmem>>, vector<1x32xf32>
    %c0_44 = arith.constant 0 : index
    %c0_45 = arith.constant 0 : index
    %176 = vector.load %arg12[%c0_44, %c0_45] : memref<1x32xf32, #tpu.memory_space<vmem>>, vector<1x32xf32>
    %cst_46 = arith.constant dense<0.000000e+00> : vector<8xf32>
    %177 = vector.multi_reduction <add>, %174, %cst_46 [1] : vector<8x32xf32> to vector<8xf32>
    %178 = vector.shape_cast %177 : vector<8xf32> to vector<8x1xf32>
    %cst_47 = arith.constant 3.200000e+01 : f32
    %179 = vector.broadcast %cst_47 : f32 to vector<8x1xf32>
    %180 = arith.divf %178, %179 : vector<8x1xf32>
    %181 = vector.broadcast %180 : vector<8x1xf32> to vector<8x32xf32>
    %182 = arith.subf %174, %181 : vector<8x32xf32>
    %183 = arith.mulf %182, %182 : vector<8x32xf32>
    %cst_48 = arith.constant dense<0.000000e+00> : vector<8xf32>
    %184 = vector.multi_reduction <add>, %183, %cst_48 [1] : vector<8x32xf32> to vector<8xf32>
    %185 = vector.shape_cast %184 : vector<8xf32> to vector<8x1xf32>
    %cst_49 = arith.constant 3.200000e+01 : f32
    %186 = vector.broadcast %cst_49 : f32 to vector<8x1xf32>
    %187 = arith.divf %185, %186 : vector<8x1xf32>
    %188 = vector.broadcast %180 : vector<8x1xf32> to vector<8x32xf32>
    %189 = arith.subf %174, %188 : vector<8x32xf32>
    %cst_50 = arith.constant 9.99999974E-6 : f32
    %190 = vector.broadcast %cst_50 : f32 to vector<8x1xf32>
    %191 = arith.addf %187, %190 : vector<8x1xf32>
    %192 = math.rsqrt %191 : vector<8x1xf32>
    %193 = vector.broadcast %192 : vector<8x1xf32> to vector<8x32xf32>
    %194 = arith.mulf %189, %193 : vector<8x32xf32>
    %195 = vector.broadcast %175 : vector<1x32xf32> to vector<8x32xf32>
    %196 = arith.mulf %194, %195 : vector<8x32xf32>
    %197 = vector.broadcast %176 : vector<1x32xf32> to vector<8x32xf32>
    %198 = arith.addf %196, %197 : vector<8x32xf32>
    %199 = arith.truncf %198 : vector<8x32xf32> to vector<8x32xbf16>
    %c0_51 = arith.constant 0 : index
    %c0_52 = arith.constant 0 : index
    %200 = vector.load %arg13[%c0_51, %c0_52] : memref<32x128xbf16, #tpu.memory_space<vmem>>, vector<32x128xbf16>
    %cst_53 = arith.constant dense<0.000000e+00> : vector<8x128xf32>
    %201 = tpu.matmul %199, %200, %cst_53 {dimension_numbers = #tpu.dot_dimension_numbers<[1], [0], [0], [1], [0, 0, 1, 1], [], []>} : vector<8x32xbf16>, vector<32x128xbf16>, vector<8x128xf32> -> vector<8x128xf32>
    %c0_54 = arith.constant 0 : index
    %c0_55 = arith.constant 0 : index
    %202 = vector.load %arg14[%c0_54, %c0_55] : memref<1x128xf32, #tpu.memory_space<vmem>>, vector<1x128xf32>
    %203 = vector.broadcast %202 : vector<1x128xf32> to vector<8x128xf32>
    %204 = arith.addf %201, %203 : vector<8x128xf32>
    %cst_56 = arith.constant 5.000000e-01 : f32
    %205 = vector.broadcast %cst_56 : f32 to vector<8x128xf32>
    %206 = arith.mulf %205, %204 : vector<8x128xf32>
    %cst_57 = arith.constant 0.707106769 : f32
    %207 = vector.broadcast %cst_57 : f32 to vector<8x128xf32>
    %208 = arith.mulf %204, %207 : vector<8x128xf32>
    %209 = math.erf %208 : vector<8x128xf32>
    %cst_58 = arith.constant 1.000000e+00 : f32
    %210 = vector.broadcast %cst_58 : f32 to vector<8x128xf32>
    %211 = arith.addf %210, %209 : vector<8x128xf32>
    %212 = arith.mulf %206, %211 : vector<8x128xf32>
    %213 = arith.truncf %212 : vector<8x128xf32> to vector<8x128xbf16>
    %c0_59 = arith.constant 0 : index
    %c0_60 = arith.constant 0 : index
    %214 = vector.load %arg15[%c0_59, %c0_60] : memref<128x32xbf16, #tpu.memory_space<vmem>>, vector<128x32xbf16>
    %cst_61 = arith.constant dense<0.000000e+00> : vector<8x32xf32>
    %215 = tpu.matmul %213, %214, %cst_61 {dimension_numbers = #tpu.dot_dimension_numbers<[1], [0], [0], [1], [0, 0, 1, 1], [], []>} : vector<8x128xbf16>, vector<128x32xbf16>, vector<8x32xf32> -> vector<8x32xf32>
    %c0_62 = arith.constant 0 : index
    %c0_63 = arith.constant 0 : index
    %216 = vector.load %arg16[%c0_62, %c0_63] : memref<1x32xf32, #tpu.memory_space<vmem>>, vector<1x32xf32>
    %217 = vector.broadcast %216 : vector<1x32xf32> to vector<8x32xf32>
    %218 = arith.addf %215, %217 : vector<8x32xf32>
    %219 = arith.addf %174, %218 : vector<8x32xf32>
    %c0_64 = arith.constant 0 : index
    %c0_65 = arith.constant 0 : index
    %220 = vector.load %arg17[%c0_64, %c0_65] : memref<8x32xf32, #tpu.memory_space<vmem>>, vector<8x32xf32>
    tpu.vector_store %arg17[%c0_64, %c0_65], %219 {strides = array<i32>} : memref<8x32xf32, #tpu.memory_space<vmem>>, vector<8x32xf32>,
    return
  }
  func.func @transform_0(%arg0: i32) -> (i32, i32) {
    %c0_i32 = arith.constant 0 : i32
    %c0_i32_0 = arith.constant 0 : i32
    return %arg0, %c0_i32 : i32, i32
  }
  func.func @transform_1(%arg0: i32) -> (i32, i32, i32) {
    %c0_i32 = arith.constant 0 : i32
    %c0_i32_0 = arith.constant 0 : i32
    %c0_i32_1 = arith.constant 0 : i32
    return %arg0, %c0_i32, %c0_i32_0 : i32, i32, i32
  }
  func.func @transform_2(%arg0: i32) -> (i32, i32) {
    %c0_i32 = arith.constant 0 : i32
    %c0_i32_0 = arith.constant 0 : i32
    %c0_i32_1 = arith.constant 0 : i32
    return %c0_i32, %c0_i32_0 : i32, i32
  }
  func.func @transform_3(%arg0: i32) -> (i32, i32) {
    %c0_i32 = arith.constant 0 : i32
    %c0_i32_0 = arith.constant 0 : i32
    %c0_i32_1 = arith.constant 0 : i32
    return %c0_i32, %c0_i32_0 : i32, i32
  }
  func.func @transform_4(%arg0: i32) -> (i32, i32) {
    %c0_i32 = arith.constant 0 : i32
    %c0_i32_0 = arith.constant 0 : i32
    %c0_i32_1 = arith.constant 0 : i32
    return %c0_i32, %c0_i32_0 : i32, i32
  }
  func.func @transform_5(%arg0: i32) -> (i32, i32) {
    %c0_i32 = arith.constant 0 : i32
    %c0_i32_0 = arith.constant 0 : i32
    %c0_i32_1 = arith.constant 0 : i32
    return %c0_i32, %c0_i32_0 : i32, i32
  }
  func.func @transform_6(%arg0: i32) -> (i32, i32) {
    %c0_i32 = arith.constant 0 : i32
    %c0_i32_0 = arith.constant 0 : i32
    %c0_i32_1 = arith.constant 0 : i32
    return %c0_i32, %c0_i32_0 : i32, i32
  }
  func.func @transform_7(%arg0: i32) -> (i32, i32) {
    %c0_i32 = arith.constant 0 : i32
    %c0_i32_0 = arith.constant 0 : i32
    %c0_i32_1 = arith.constant 0 : i32
    return %c0_i32, %c0_i32_0 : i32, i32
  }
  func.func @transform_8(%arg0: i32) -> (i32, i32) {
    %c0_i32 = arith.constant 0 : i32
    %c0_i32_0 = arith.constant 0 : i32
    %c0_i32_1 = arith.constant 0 : i32
    return %c0_i32, %c0_i32_0 : i32, i32
  }
  func.func @transform_9(%arg0: i32) -> (i32, i32) {
    %c0_i32 = arith.constant 0 : i32
    %c0_i32_0 = arith.constant 0 : i32
    %c0_i32_1 = arith.constant 0 : i32
    return %c0_i32, %c0_i32_0 : i32, i32
  }
  func.func @transform_10(%arg0: i32) -> (i32, i32) {
    %c0_i32 = arith.constant 0 : i32
    %c0_i32_0 = arith.constant 0 : i32
    %c0_i32_1 = arith.constant 0 : i32
    return %c0_i32, %c0_i32_0 : i32, i32
  }
  func.func @transform_11(%arg0: i32) -> (i32, i32) {
    %c0_i32 = arith.constant 0 : i32
    %c0_i32_0 = arith.constant 0 : i32
    %c0_i32_1 = arith.constant 0 : i32
    return %c0_i32, %c0_i32_0 : i32, i32
  }
  func.func @transform_12(%arg0: i32) -> (i32, i32) {
    %c0_i32 = arith.constant 0 : i32
    %c0_i32_0 = arith.constant 0 : i32
    %c0_i32_1 = arith.constant 0 : i32
    return %c0_i32, %c0_i32_0 : i32, i32
  }
  func.func @transform_13(%arg0: i32) -> (i32, i32) {
    %c0_i32 = arith.constant 0 : i32
    %c0_i32_0 = arith.constant 0 : i32
    %c0_i32_1 = arith.constant 0 : i32
    return %c0_i32, %c0_i32_0 : i32, i32
  }
  func.func @transform_14(%arg0: i32) -> (i32, i32) {
    %c0_i32 = arith.constant 0 : i32
    %c0_i32_0 = arith.constant 0 : i32
    %c0_i32_1 = arith.constant 0 : i32
    return %c0_i32, %c0_i32_0 : i32, i32
  }
  func.func @transform_15(%arg0: i32) -> (i32, i32) {
    %c0_i32 = arith.constant 0 : i32
    %c0_i32_0 = arith.constant 0 : i32
    %c0_i32_1 = arith.constant 0 : i32
    return %c0_i32, %c0_i32_0 : i32, i32
  }
  func.func @transform_16(%arg0: i32) -> (i32, i32) {
    %c0_i32 = arith.constant 0 : i32
    %c0_i32_0 = arith.constant 0 : i32
    return %arg0, %c0_i32 : i32, i32
  }
}

</mosaic_0001>

<llo_original>
// kernel: esm2_forward.5
$region0: #{esm2_forward.5}
  #allocation0 [shape = 'u32[]', space=smem, size = 0x4, offset = 0x4, fixed_abs, tag = 'smem constant byte address 0x4 - core index']
  #allocation1 [shape = 'u32[72,128]{1,0:T(1,128)}', space=vmem, size = 0x9000, scoped, tag = 'internal scratch']
  %s0 = inlined_call_operand.vmem [shape: f32[16,32], index: 0, kind: input, shape index: {}]
  %s1 = inlined_call_operand.vmem [shape: f32[1,32], index: 1, kind: input, shape index: {}]
  %s2 = inlined_call_operand.vmem [shape: f32[1,32], index: 2, kind: input, shape index: {}]
  %s3 = inlined_call_operand.vmem [shape: bf16[32,32], index: 3, kind: input, shape index: {}]
  %s4 = inlined_call_operand.vmem [shape: f32[1,32], index: 4, kind: input, shape index: {}]
  %s5 = inlined_call_operand.vmem [shape: f32[1,32], index: 5, kind: input, shape index: {}]
  %s6 = inlined_call_operand.vmem [shape: f32[1,32], index: 6, kind: input, shape index: {}]
  %s7 = inlined_call_operand.vmem [shape: bf16[32,128], index: 7, kind: input, shape index: {}]
  %s8 = inlined_call_operand.vmem [shape: f32[1,128], index: 8, kind: input, shape index: {}]
  %s9 = inlined_call_operand.vmem [shape: f32[16,128], index: 9, kind: output, shape index: {}]
  %s10 = sld [smem:[#allocation0]]
  $region69: #{esm2_forward.5} parent=0
    _
  %s12 = ssub.s32 1, %s10
  %s13 = scalar_select 0, %s12, %s10
  loop: start=0, step=1, limit=4
  $region2: #{esm2_forward.5} parent=0 // loop_pre_header
    _
  $region3: #{esm2_forward.5} parent=0 // loop_header
    %s15 = sphi 0, %s19
    %p16 = scmp.ge.s32.totalorder %s15, 4
    %s25 = sphi 0, %s27
    %s28 = sphi 0, %s25
    %s29 = sphi 0, %s28
    %s45 = sphi 0, %s29
    %s49 = sphi 0, %s49
    %s51 = sphi 0, %s49
    %s52 = sphi 0, %s51
    %s66 = sphi 0, %s52
    %s70 = sphi 0, %s70
    %s72 = sphi 0, %s70
    %s73 = sphi 0, %s72
    %s87 = sphi 0, %s73
    %s91 = sphi 0, %s91
    %s93 = sphi 0, %s91
    %s94 = sphi 0, %s93
    %s108 = sphi 0, %s94
    %s112 = sphi 0, %s112
    %s114 = sphi 0, %s112
    %s115 = sphi 0, %s114
    %s129 = sphi 0, %s115
    %s133 = sphi 0, %s133
    %s135 = sphi 0, %s133
    %s136 = sphi 0, %s135
    %s150 = sphi 0, %s136
    %s154 = sphi 0, %s154
    %s156 = sphi 0, %s154
    %s157 = sphi 0, %s156
    %s171 = sphi 0, %s157
    %s175 = sphi 0, %s175
    %s177 = sphi 0, %s175
    %s178 = sphi 0, %s177
    %s192 = sphi 0, %s178
    %s196 = sphi 0, %s196
    %s198 = sphi 0, %s196
    %s199 = sphi 0, %s198
    %s213 = sphi 0, %s199
    %s219 = sphi 0, %s221
    %s222 = sphi 0, %s219
    %s223 = sphi 0, %s222
    %s239 = sphi 0, %s223
  $region4: #{esm2_forward.5} parent=0 // loop_header_branch
    %18 = sbr.rel (%p16) target = $region8
  $region5: #{esm2_forward.5} parent=0 // loop_body
    %s20 = ssub.s32 %s15, 1
    %s21 = ssub.s32 %s15, 2
    %s22 = sadd.s32 %s15, 1
    %s23 = ssub.s32 %s15, %s22
    %p24 = scmp.eq.s32.totalorder %s23, 0
    %s26 = sadd.s32 %s25, 1
    %s27 = scalar_select %p24, %s25, %s26
    %p30 = pneg %p24
    %p31 = scmp.eq.s32.totalorder %s15, 1
    %p32 = por %p30, %p31
    %p33 = scmp.ne.s32.totalorder %s25, %s28
    %p34 = scmp.eq.s32.totalorder %s15, 0
    %p35 = por %p33, %p34
    %p36 = scmp.ne.s32.totalorder %s25, %s28
    %p37 = scmp.eq.s32.totalorder %s20, 1
    %p38 = por %p36, %p37
    %p39 = scmp.ne.s32.totalorder %s28, %s29
    %p40 = scmp.eq.s32.totalorder %s20, 0
    %p41 = por %p39, %p40
    %p42 = scmp.ne.s32.totalorder %s28, %s29
    %p43 = scmp.eq.s32.totalorder %s21, 1
    %p44 = por %p42, %p43
    %p46 = scmp.ne.s32.totalorder %s29, %s45
    %p47 = scmp.eq.s32.totalorder %s21, 0
    %p48 = por %p46, %p47
    %s50 = sadd.s32 %s49, 1
    %p53 = scmp.eq.s32.totalorder %s15, 1
    %p54 = scmp.ne.s32.totalorder %s49, %s51
    %p55 = scmp.eq.s32.totalorder %s15, 0
    %p56 = por %p54, %p55
    %p57 = scmp.ne.s32.totalorder %s49, %s51
    %p58 = scmp.eq.s32.totalorder %s20, 1
    %p59 = por %p57, %p58
    %p60 = scmp.ne.s32.totalorder %s51, %s52
    %p61 = scmp.eq.s32.totalorder %s20, 0
    %p62 = por %p60, %p61
    %p63 = scmp.ne.s32.totalorder %s51, %s52
    %p64 = scmp.eq.s32.totalorder %s21, 1
    %p65 = por %p63, %p64
    %p67 = scmp.ne.s32.totalorder %s52, %s66
    %p68 = scmp.eq.s32.totalorder %s21, 0
    %p69 = por %p67, %p68
    %s71 = sadd.s32 %s70, 1
    %p74 = scmp.eq.s32.totalorder %s15, 1
    %p75 = scmp.ne.s32.totalorder %s70, %s72
    %p76 = scmp.eq.s32.totalorder %s15, 0
    %p77 = por %p75, %p76
    %p78 = scmp.ne.s32.totalorder %s70, %s72
    %p79 = scmp.eq.s32.totalorder %s20, 1
    %p80 = por %p78, %p79
    %p81 = scmp.ne.s32.totalorder %s72, %s73
    %p82 = scmp.eq.s32.totalorder %s20, 0
    %p83 = por %p81, %p82
    %p84 = scmp.ne.s32.totalorder %s72, %s73
    %p85 = scmp.eq.s32.totalorder %s21, 1
    %p86 = por %p84, %p85
    %p88 = scmp.ne.s32.totalorder %s73, %s87
    %p89 = scmp.eq.s32.totalorder %s21, 0
    %p90 = por %p88, %p89
    %s92 = sadd.s32 %s91, 1
    %p95 = scmp.eq.s32.totalorder %s15, 1
    %p96 = scmp.ne.s32.totalorder %s91, %s93
    %p97 = scmp.eq.s32.totalorder %s15, 0
    %p98 = por %p96, %p97
    %p99 = scmp.ne.s32.totalorder %s91, %s93
    %p100 = scmp.eq.s32.totalorder %s20, 1
    %p101 = por %p99, %p100
    %p102 = scmp.ne.s32.totalorder %s93, %s94
    %p103 = scmp.eq.s32.totalorder %s20, 0
    %p104 = por %p102, %p103
    %p105 = scmp.ne.s32.totalorder %s93, %s94
    %p106 = scmp.eq.s32.totalorder %s21, 1
    %p107 = por %p105, %p106
    %p109 = scmp.ne.s32.totalorder %s94, %s108
    %p110 = scmp.eq.s32.totalorder %s21, 0
    %p111 = por %p109, %p110
    %s113 = sadd.s32 %s112, 1
    %p116 = scmp.eq.s32.totalorder %s15, 1
    %p117 = scmp.ne.s32.totalorder %s112, %s114
    %p118 = scmp.eq.s32.totalorder %s15, 0
    %p119 = por %p117, %p118
    %p120 = scmp.ne.s32.totalorder %s112, %s114
    %p121 = scmp.eq.s32.totalorder %s20, 1
    %p122 = por %p120, %p121
    %p123 = scmp.ne.s32.totalorder %s114, %s115
    %p124 = scmp.eq.s32.totalorder %s20, 0
    %p125 = por %p123, %p124
    %p126 = scmp.ne.s32.totalorder %s114, %s115
    %p127 = scmp.eq.s32.totalorder %s21, 1
    %p128 = por %p126, %p127
    %p130 = scmp.ne.s32.totalorder %s115, %s129
    %p131 = scmp.eq.s32.totalorder %s21, 0
    %p132 = por %p130, %p131
    %s134 = sadd.s32 %s133, 1
    %p137 = scmp.eq.s32.totalorder %s15, 1
    %p138 = scmp.ne.s32.totalorder %s133, %s135
    %p139 = scmp.eq.s32.totalorder %s15, 0
    %p140 = por %p138, %p139
    %p141 = scmp.ne.s32.totalorder %s133, %s135
    %p142 = scmp.eq.s32.totalorder %s20, 1
    %p143 = por %p141, %p142
    %p144 = scmp.ne.s32.totalorder %s135, %s136
    %p145 = scmp.eq.s32.totalorder %s20, 0
    %p146 = por %p144, %p145
    %p147 = scmp.ne.s32.totalorder %s135, %s136
    %p148 = scmp.eq.s32.totalorder %s21, 1
    %p149 = por %p147, %p148
    %p151 = scmp.ne.s32.totalorder %s136, %s150
    %p152 = scmp.eq.s32.totalorder %s21, 0
    %p153 = por %p151, %p152
    %s155 = sadd.s32 %s154, 1
    %p158 = scmp.eq.s32.totalorder %s15, 1
    %p159 = scmp.ne.s32.totalorder %s154, %s156
    %p160 = scmp.eq.s32.totalorder %s15, 0
    %p161 = por %p159, %p160
    %p162 = scmp.ne.s32.totalorder %s154, %s156
    %p163 = scmp.eq.s32.totalorder %s20, 1
    %p164 = por %p162, %p163
    %p165 = scmp.ne.s32.totalorder %s156, %s157
    %p166 = scmp.eq.s32.totalorder %s20, 0
    %p167 = por %p165, %p166
    %p168 = scmp.ne.s32.totalorder %s156, %s157
    %p169 = scmp.eq.s32.totalorder %s21, 1
    %p170 = por %p168, %p169
    %p172 = scmp.ne.s32.totalorder %s157, %s171
    %p173 = scmp.eq.s32.totalorder %s21, 0
    %p174 = por %p172, %p173
    %s176 = sadd.s32 %s175, 1
    %p179 = scmp.eq.s32.totalorder %s15, 1
    %p180 = scmp.ne.s32.totalorder %s175, %s177
    %p181 = scmp.eq.s32.totalorder %s15, 0
    %p182 = por %p180, %p181
    %p183 = scmp.ne.s32.totalorder %s175, %s177
    %p184 = scmp.eq.s32.totalorder %s20, 1
    %p185 = por %p183, %p184
    %p186 = scmp.ne.s32.totalorder %s177, %s178
    %p187 = scmp.eq.s32.totalorder %s20, 0
    %p188 = por %p186, %p187
    %p189 = scmp.ne.s32.totalorder %s177, %s178
    %p190 = scmp.eq.s32.totalorder %s21, 1
    %p191 = por %p189, %p190
    %p193 = scmp.ne.s32.totalorder %s178, %s192
    %p194 = scmp.eq.s32.totalorder %s21, 0
    %p195 = por %p193, %p194
    %s197 = sadd.s32 %s196, 1
    %p200 = scmp.eq.s32.totalorder %s15, 1
    %p201 = scmp.ne.s32.totalorder %s196, %s198
    %p202 = scmp.eq.s32.totalorder %s15, 0
    %p203 = por %p201, %p202
    %p204 = scmp.ne.s32.totalorder %s196, %s198
    %p205 = scmp.eq.s32.totalorder %s20, 1
    %p206 = por %p204, %p205
    %p207 = scmp.ne.s32.totalorder %s198, %s199
    %p208 = scmp.eq.s32.totalorder %s20, 0
    %p209 = por %p207, %p208
    %p210 = scmp.ne.s32.totalorder %s198, %s199
    %p211 = scmp.eq.s32.totalorder %s21, 1
    %p212 = por %p210, %p211
    %p214 = scmp.ne.s32.totalorder %s199, %s213
    %p215 = scmp.eq.s32.totalorder %s21, 0
    %p216 = por %p214, %p215
    %s217 = ssub.s32 %s15, %s22
    %p218 = scmp.eq.s32.totalorder %s217, 0
    %s220 = sadd.s32 %s219, 1
    %s221 = scalar_select %p218, %s219, %s220
    %p224 = pneg %p218
    %p225 = scmp.eq.s32.totalorder %s15, 1
    %p226 = por %p224, %p225
    %p227 = scmp.ne.s32.totalorder %s219, %s222
    %p228 = scmp.eq.s32.totalorder %s15, 0
    %p229 = por %p227, %p228
    %p230 = scmp.ne.s32.totalorder %s219, %s222
    %p231 = scmp.eq.s32.totalorder %s20, 1
    %p232 = por %p230, %p231
    %p233 = scmp.ne.s32.totalorder %s222, %s223
    %p234 = scmp.eq.s32.totalorder %s20, 0
    %p235 = por %p233, %p234
    %p236 = scmp.ne.s32.totalorder %s222, %s223
    %p237 = scmp.eq.s32.totalorder %s21, 1
    %p238 = por %p236, %p237
    %p240 = scmp.ne.s32.totalorder %s223, %s239
    %p241 = scmp.eq.s32.totalorder %s21, 0
    %p242 = por %p240, %p241
    %p243 = scmp.le.s32.totalorder 1, %s15
    %p244 = scmp.lt.s32.totalorder %s15, 3
    %p245 = pnand %p243, %p244
    %p246 = pneg %p245
    // Predicated region
    $region9: #{esm2_forward.5} parent=5 // pred_check
      _
    $region10: #{esm2_forward.5} parent=5 // pred_check_branch
      %248 = sbr.rel (%p245) target = $region12
    $region11: #{esm2_forward.5} parent=5 // pred_region
      %s249 = ssub.s32 %s15, 1
      // Predicated region
      $region13: #{esm2_forward.5} parent=11 // pred_check
        %p250 = pneg %p62
      $region14: #{esm2_forward.5} parent=11 // pred_check_branch
        %252 = sbr.rel (%p250) target = $region16
      $region15: #{esm2_forward.5} parent=11 // pred_region
        _
      $region16: #{esm2_forward.5} parent=11 // pred_fallthru
        _
      // Predicated region
      $region17: #{esm2_forward.5} parent=11 // pred_check
        %p253 = pneg %p83
      $region18: #{esm2_forward.5} parent=11 // pred_check_branch
        %255 = sbr.rel (%p253) target = $region20
      $region19: #{esm2_forward.5} parent=11 // pred_region
        _
      $region20: #{esm2_forward.5} parent=11 // pred_fallthru
        _
      // Predicated region
      $region21: #{esm2_forward.5} parent=11 // pred_check
        %p256 = pneg %p104
      $region22: #{esm2_forward.5} parent=11 // pred_check_branch
        %258 = sbr.rel (%p256) target = $region24
      $region23: #{esm2_forward.5} parent=11 // pred_region
        _
      $region24: #{esm2_forward.5} parent=11 // pred_fallthru
        _
      // Predicated region
      $region25: #{esm2_forward.5} parent=11 // pred_check
        %p259 = pneg %p125
      $region26: #{esm2_forward.5} parent=11 // pred_check_branch
        %261 = sbr.rel (%p259) target = $region28
      $region27: #{esm2_forward.5} parent=11 // pred_region
        _
      $region28: #{esm2_forward.5} parent=11 // pred_fallthru
        _
      // Predicated region
      $region29: #{esm2_forward.5} parent=11 // pred_check
        %p262 = pneg %p146
      $region30: #{esm2_forward.5} parent=11 // pred_check_branch
        %264 = sbr.rel (%p262) target = $region32
      $region31: #{esm2_forward.5} parent=11 // pred_region
        _
      $region32: #{esm2_forward.5} parent=11 // pred_fallthru
        _
      // Predicated region
      $region33: #{esm2_forward.5} parent=11 // pred_check
        %p265 = pneg %p167
      $region34: #{esm2_forward.5} parent=11 // pred_check_branch
        %267 = sbr.rel (%p265) target = $region36
      $region35: #{esm2_forward.5} parent=11 // pred_region
        _
      $region36: #{esm2_forward.5} parent=11 // pred_fallthru
        _
      // Predicated region
      $region37: #{esm2_forward.5} parent=11 // pred_check
        %p268 = pneg %p188
      $region38: #{esm2_forward.5} parent=11 // pred_check_branch
        %270 = sbr.rel (%p268) target = $region40
      $region39: #{esm2_forward.5} parent=11 // pred_region
        _
      $region40: #{esm2_forward.5} parent=11 // pred_fallthru
        _
      // Predicated region
      $region41: #{esm2_forward.5} parent=11 // pred_check
        %p271 = pneg %p209
      $region42: #{esm2_forward.5} parent=11 // pred_check_branch
        %273 = sbr.rel (%p271) target = $region44
      $region43: #{esm2_forward.5} parent=11 // pred_region
        _
      $region44: #{esm2_forward.5} parent=11 // pred_fallthru
        _
    $region12: #{esm2_forward.5} parent=5 // pred_fallthru
      _
    %p274 = scmp.lt.s32.totalorder %s15, 2
    // Predicated region
    $region45: #{esm2_forward.5} parent=5 // pred_check
      %p275 = pneg %p274
    $region46: #{esm2_forward.5} parent=5 // pred_check_branch
      %277 = sbr.rel (%p275) target = $region48
    $region47: #{esm2_forward.5} parent=5 // pred_region
      // Predicated region
      $region49: #{esm2_forward.5} parent=47 // pred_check
        %p278 = pneg %p35
      $region50: #{esm2_forward.5} parent=47 // pred_check_branch
        %280 = sbr.rel (%p278) target = $region52
      $region51: #{esm2_forward.5} parent=47 // pred_region
        %p281 = scmp.lt.s32.totalorder %s15, 1
        %s282 = scalar_select %p281, %s15, 1
        %s283 = smul.addr %s282, 8
        %s284 = scalar_lea.vmem %s0, %s283
      $region52: #{esm2_forward.5} parent=47 // pred_fallthru
        _
    $region48: #{esm2_forward.5} parent=5 // pred_fallthru
      _
    %p285 = scmp.le.s32.totalorder 1, %s15
    %p286 = scmp.lt.s32.totalorder %s15, 3
    %p287 = pnand %p285, %p286
    %p288 = pneg %p287
    // Predicated region
    $region53: #{esm2_forward.5} parent=5 // pred_check
      _
    $region54: #{esm2_forward.5} parent=5 // pred_check_branch
      %290 = sbr.rel (%p287) target = $region56
    $region55: #{esm2_forward.5} parent=5 // pred_region
      %s291 = ssub.s32 %s15, 1
      %p292 = scmp.lt.s32.totalorder %s20, 1
      %s293 = scalar_select %p292, %s20, 1
      %s294 = smul.addr %s293, 8
      %s295 = scalar_lea.vmem %s0, %s294
      %p296 = pneg %p41
      %p297 = pneg %p38
      %p298 = pneg %p62
      %p299 = pneg %p59
      %p300 = pneg %p83
      %p301 = pneg %p80
      %p302 = pneg %p104
      %p303 = pneg %p101
      %p304 = pneg %p125
      %p305 = pneg %p122
      %p306 = pneg %p146
      %p307 = pneg %p143
      %p308 = pneg %p167
      %p309 = pneg %p164
      %p310 = pneg %p188
      %p311 = pneg %p185
      %p312 = pneg %p209
      %p313 = pneg %p206
      %p314 = pneg %p235
      %p315 = pneg %p232
      %p316 = scmp.lt.s32.totalorder %s20, 1
      %s317 = scalar_select %p316, %s20, 1
      %s318 = smul.addr %s317, 8
      %s319 = scalar_lea.vmem %s9, %s318
      %p320 = scmp.lt.s32.totalorder %s20, 1
      %s321 = scalar_select %p320, %s20, 1
      %s322 = smul.addr %s321, 8
      %s323 = scalar_lea.vmem %s0, %s322
      %p324 = scmp.lt.s32.totalorder %s20, 1
      %s325 = scalar_select %p324, %s20, 1
      %s326 = smul.addr %s325, 8
      %s327 = scalar_lea.vmem %s9, %s326
      %v329 = vld [vmem:[%s323] sm:$0xff]
      %v330 = vld [vmem:[%s1] sm:$0x1]
      %v331 = vld [vmem:[%s2] sm:$0x1]
      %vm332 = vcmask 261120
      %v333 = vsel %vm332, %v329, 0.0
      %334 = vadd.xlane.f32.xlu0 %v333
      %v335 = vpop.xlane.xlu0 %334
      %v336 = vrcp.pop 32.0
      %v337 = vmul.f32 32.0, %v336
      %v338 = vsub.f32 1.0, %v337
      %v339 = vmul.f32 %v336, %v338
      %v340 = vadd.f32 %v336, %v339
      %vm341 = vweird.f32 %v336
      %v342 = vsel %vm341, %v336, %v340
      %v343 = vmul.f32 %v335, %v342
      %v344 = vsub.f32 %v329, %v343
      %v345 = vmul.f32 %v344, %v344
      %v346 = vsel %vm332, %v345, 0.0
      %347 = vadd.xlane.f32.xlu0 %v346
      %v348 = vpop.xlane.xlu0 %347
      %v349 = vmul.f32 %v348, %v342
      %v350 = vadd.f32 %v349, 1e-05
      %v351 = vrsqrt.pop %v350
      %v352 = vmul.f32 %v351, %v350
      %v353 = vmul.f32 %v352, %v351
      %v354 = vmul.f32 0.5, %v353
      %v355 = vsub.f32 1.5, %v354
      %v356 = vmul.f32 %v351, %v355
      %vm357 = vweird.f32 %v350
      %vm358 = vweird.f32 %v351
      %vm359 = vmor %vm357, %vm358
      %v360 = vsel %vm359, %v351, %v356
      %v361 = vmul.f32 %v344, %v360
      %v363 = vperm.slane %v330, 0
      %v365 = vmul.f32 %v361, %v363
      %v367 = vperm.slane %v331, 0
      %v369 = vadd.f32 %v365, %v367
      %v370 = vpack.c.bf16 %v369, %v369
      %v371 = vld [vmem:[%s3] sm:$0xf]
      %v372 = vld [vmem:[%s3 + $0x4] sm:$0xf]
      %v373 = vld [vmem:[%s3 + $0x8] sm:$0xf]
      %v374 = vld [vmem:[%s3 + $0xc] sm:$0xf]
      %v375 = vld [vmem:[%s4] sm:$0x1]
      %v377 = vperm.slane %v375, 0
      %v383 = vunpack.c.l.b16 %v371
      %v384 = vunpack.c.l.b16 %v372
      %v385 = vunpack.c.l.b16 %v373
      %v386 = vunpack.c.l.b16 %v374
      %v387 = vpack.c.b16 %v384, %v383
      %v388 = vpack.c.b16 %v386, %v385
      %v392 = vsel %vm332, %v370, 0
      %394 = vmatpush.bf16.msra.mxu0 0
      %395 = vmatpush.bf16.msra.mxu0 0
      %396 = vmatpush.bf16.msra.mxu0 0
      %397 = vmatpush.bf16.msra.mxu0 0
      %398 = vmatpush.bf16.msra.mxu0 0
      %399 = vmatpush.bf16.msra.mxu0 0
      %400 = vmatpush.bf16.msra.mxu0 %v388
      %401 = vmatpush.bf16.msra.mxu0 %v387
      %402 = vmatmul.bf16.gmra.mxu0 %v392
      %v403 = vpop.f32.mrf.mxu0
      %v404 = vadd.f32 %v377, %v403
      %v405 = vpop.f32.mrf.mxu0
      %406 = vdwg.mxu0
      %v407 = vmul.f32 %v404, 0.5
      %v408 = vmul.f32 %v404, 0.70710677
      %v409 = vmul.f32 %v408, %v408
      %v410 = vmin.f32 16.0, %v409
      %v411 = vmul.f32 %v410, 2.1237322e-06
      %v412 = vadd.f32 %v411, 0.00028619796
      %v413 = vmul.f32 %v410, %v412
      %v414 = vadd.f32 %v413, 0.0036580483
      %v415 = vmul.f32 %v410, %v414
      %v416 = vadd.f32 %v415, 0.05243302
      %v417 = vmul.f32 %v410, %v416
      %v418 = vadd.f32 %v417, 0.18741608
      %v419 = vmul.f32 %v410, %v418
      %v420 = vadd.f32 %v419, 1.1283791
      %v421 = vmul.f32 %v408, %v420
      %v422 = vmul.f32 %v410, 3.8918573e-05
      %v423 = vadd.f32 %v422, 0.001143296
      %v424 = vmul.f32 %v410, %v423
      %v425 = vadd.f32 %v424, 0.014752088
      %v426 = vmul.f32 %v410, %v425
      %v427 = vadd.f32 %v426, 0.112945676
      %v428 = vmul.f32 %v410, %v427
      %v429 = vadd.f32 %v428, 0.4994258
      %v430 = vmul.f32 %v410, %v429
      %v431 = vadd.f32 %v430, 1.0
      %v432 = vrcp.pop %v431
      %v433 = vmul.f32 %v431, %v432
      %v434 = vsub.f32 1.0, %v433
      %v435 = vmul.f32 %v432, %v434
      %v436 = vadd.f32 %v432, %v435
      %vm437 = vweird.f32 %v431
      %vm438 = vweird.f32 %v432
      %vm439 = vmor %vm437, %vm438
      %v440 = vsel %vm439, %v432, %v436
      %v441 = vand.u32 2147483647, %v431
      %vm442 = vcmp.eq.f32.partialorder %v441, 8.507059e+37
      %v443 = vand.u32 %v431, 2147483648
      %v444 = vor.u32 1.1754944e-38, %v443
      %v445 = vsel %vm442, %v444, %v440
      %v446 = vmul.f32 %v421, %v445
      %v447 = vmin.f32 %v446, 1.0
      %v448 = vmax.f32 %v447, -1.0
      %v449 = vadd.f32 %v448, 1.0
      %v450 = vmul.f32 %v407, %v449
      %v451 = vld [vmem:[%s5] sm:$0x1]
      %v452 = vld [vmem:[%s6] sm:$0x1]
      %v453 = vsel %vm332, %v450, 0.0
      %454 = vadd.xlane.f32.xlu0 %v453
      %v455 = vpop.xlane.xlu0 %454
      %v456 = vmul.f32 %v455, %v342
      %v457 = vsub.f32 %v450, %v456
      %v458 = vmul.f32 %v457, %v457
      %v459 = vsel %vm332, %v458, 0.0
      %460 = vadd.xlane.f32.xlu0 %v459
      %v461 = vpop.xlane.xlu0 %460
      %v462 = vmul.f32 %v461, %v342
      %v463 = vadd.f32 %v462, 1e-05
      %v464 = vrsqrt.pop %v463
      %v465 = vmul.f32 %v464, %v463
      %v466 = vmul.f32 %v465, %v464
      %v467 = vmul.f32 0.5, %v466
      %v468 = vsub.f32 1.5, %v467
      %v469 = vmul.f32 %v464, %v468
      %vm470 = vweird.f32 %v463
      %vm471 = vweird.f32 %v464
      %vm472 = vmor %vm470, %vm471
      %v473 = vsel %vm472, %v464, %v469
      %v474 = vmul.f32 %v457, %v473
      %v476 = vperm.slane %v451, 0
      %v478 = vmul.f32 %v474, %v476
      %v480 = vperm.slane %v452, 0
      %v482 = vadd.f32 %v478, %v480
      %v483 = vpack.c.bf16 %v482, %v482
      %v484 = vld [vmem:[%s7] sm:$0xf]
      %v485 = vld [vmem:[%s7 + $0x4] sm:$0xf]
      %v486 = vld [vmem:[%s7 + $0x8] sm:$0xf]
      %v487 = vld [vmem:[%s7 + $0xc] sm:$0xf]
      %v488 = vld [vmem:[%s8] sm:$0x1]
      %v490 = vperm.slane %v488, 0
      %v496 = vunpack.c.l.b16 %v484
      %v497 = vunpack.c.l.b16 %v485
      %v498 = vunpack.c.l.b16 %v486
      %v499 = vunpack.c.l.b16 %v487
      %v500 = vpack.c.b16 %v497, %v496
      %v501 = vpack.c.b16 %v499, %v498
      %v505 = vsel %vm332, %v483, 0
      %507 = vmatpush.bf16.msra.mxu0 0
      %508 = vmatpush.bf16.msra.mxu0 0
      %509 = vmatpush.bf16.msra.mxu0 0
      %510 = vmatpush.bf16.msra.mxu0 0
      %511 = vmatpush.bf16.msra.mxu0 0
      %512 = vmatpush.bf16.msra.mxu0 0
      %513 = vmatpush.bf16.msra.mxu0 %v501
      %514 = vmatpush.bf16.msra.mxu0 %v500
      %515 = vmatmul.bf16.gmra.mxu0 %v505
      %v516 = vpop.f32.mrf.mxu0
      %v517 = vadd.f32 %v490, %v516
      %v518 = vpop.f32.mrf.mxu0
      %519 = vdwg.mxu0
      %520 = vst [vmem:[%s327] sm:$0xff] %v517
      %p521 = scmp.lt.s32.totalorder %s20, 1
      %s522 = scalar_select %p521, %s20, 1
      %s523 = smul.addr %s522, 8
      %s524 = scalar_lea.vmem %s9, %s523
      // Predicated region
      $region57: #{esm2_forward.5} parent=55 // pred_check
        %p525 = pneg %p232
      $region58: #{esm2_forward.5} parent=55 // pred_check_branch
        %527 = sbr.rel (%p525) target = $region60
      $region59: #{esm2_forward.5} parent=55 // pred_region
        _
      $region60: #{esm2_forward.5} parent=55 // pred_fallthru
        _
    $region56: #{esm2_forward.5} parent=5 // pred_fallthru
      _
    %p528 = scmp.le.s32.totalorder 2, %s15
    // Predicated region
    $region61: #{esm2_forward.5} parent=5 // pred_check
      %p529 = pneg %p528
    $region62: #{esm2_forward.5} parent=5 // pred_check_branch
      %531 = sbr.rel (%p529) target = $region64
    $region63: #{esm2_forward.5} parent=5 // pred_region
      %s532 = ssub.s32 %s15, 2
      // Predicated region
      $region65: #{esm2_forward.5} parent=63 // pred_check
        %p533 = pneg %p238
      $region66: #{esm2_forward.5} parent=63 // pred_check_branch
        %535 = sbr.rel (%p533) target = $region68
      $region67: #{esm2_forward.5} parent=63 // pred_region
        %p536 = scmp.lt.s32.totalorder %s21, 1
        %s537 = scalar_select %p536, %s21, 1
        %s538 = smul.addr %s537, 8
        %s539 = scalar_lea.vmem %s9, %s538
      $region68: #{esm2_forward.5} parent=63 // pred_fallthru
        _
    $region64: #{esm2_forward.5} parent=5 // pred_fallthru
      _
  $region6: #{esm2_forward.5} parent=0 // loop_footer
    %s19 = sadd.s32 1, %s15
  $region7: #{esm2_forward.5} parent=0 // loop_footer_branch
    %14 = sbr.rel target = $region3
  $region8: #{esm2_forward.5} parent=0 // loop_exit
    _

// kernel: esm2_forward.3
$region0: #{esm2_forward.3}
  #allocation0 [shape = 'u32[]', space=smem, size = 0x4, offset = 0x4, fixed_abs, tag = 'smem constant byte address 0x4 - core index']
  #allocation1 [shape = 'u32[72,128]{1,0:T(1,128)}', space=vmem, size = 0x9000, scoped, tag = 'internal scratch']
  %s0 = inlined_call_operand.vmem [shape: f32[16,32], index: 0, kind: input, shape index: {}]
  %s1 = inlined_call_operand.vmem [shape: f32[2,1,8], index: 1, kind: input, shape index: {}]
  %s2 = inlined_call_operand.vmem [shape: f32[8,8], index: 2, kind: input, shape index: {}]
  %s3 = inlined_call_operand.vmem [shape: f32[8,8], index: 3, kind: input, shape index: {}]
  %s4 = inlined_call_operand.vmem [shape: f32[1,32], index: 4, kind: input, shape index: {}]
  %s5 = inlined_call_operand.vmem [shape: f32[1,32], index: 5, kind: input, shape index: {}]
  %s6 = inlined_call_operand.vmem [shape: bf16[32,96], index: 6, kind: input, shape index: {}]
  %s7 = inlined_call_operand.vmem [shape: f32[1,96], index: 7, kind: input, shape index: {}]
  %s8 = inlined_call_operand.vmem [shape: bf16[32,32], index: 8, kind: input, shape index: {}]
  %s9 = inlined_call_operand.vmem [shape: f32[1,32], index: 9, kind: input, shape index: {}]
  %s10 = inlined_call_operand.vmem [shape: f32[1,32], index: 10, kind: input, shape index: {}]
  %s11 = inlined_call_operand.vmem [shape: f32[1,32], index: 11, kind: input, shape index: {}]
  %s12 = inlined_call_operand.vmem [shape: bf16[32,128], index: 12, kind: input, shape index: {}]
  %s13 = inlined_call_operand.vmem [shape: f32[1,128], index: 13, kind: input, shape index: {}]
  %s14 = inlined_call_operand.vmem [shape: bf16[128,32], index: 14, kind: input, shape index: {}]
  %s15 = inlined_call_operand.vmem [shape: f32[1,32], index: 15, kind: input, shape index: {}]
  %s16 = inlined_call_operand.vmem [shape: f32[16,32], index: 16, kind: output, shape index: {}]
  %s17 = sld [smem:[#allocation0]]
  $region97: #{esm2_forward.3} parent=0
    _
  %s19 = ssub.s32 1, %s17
  %s20 = scalar_select 0, %s19, %s17
  loop: start=0, step=1, limit=4
  $region2: #{esm2_forward.3} parent=0 // loop_pre_header
    _
  $region3: #{esm2_forward.3} parent=0 // loop_header
    %s22 = sphi 0, %s26
    %p23 = scmp.ge.s32.totalorder %s22, 4
    %s32 = sphi 0, %s34
    %s35 = sphi 0, %s32
    %s36 = sphi 0, %s35
    %s52 = sphi 0, %s36
    %s58 = sphi 0, %s60
    %s61 = sphi 0, %s58
    %s62 = sphi 0, %s61
    %s78 = sphi 0, %s62
    %s82 = sphi 0, %s82
    %s84 = sphi 0, %s82
    %s85 = sphi 0, %s84
    %s99 = sphi 0, %s85
    %s103 = sphi 0, %s103
    %s105 = sphi 0, %s103
    %s106 = sphi 0, %s105
    %s120 = sphi 0, %s106
    %s124 = sphi 0, %s124
    %s126 = sphi 0, %s124
    %s127 = sphi 0, %s126
    %s141 = sphi 0, %s127
    %s145 = sphi 0, %s145
    %s147 = sphi 0, %s145
    %s148 = sphi 0, %s147
    %s162 = sphi 0, %s148
    %s166 = sphi 0, %s166
    %s168 = sphi 0, %s166
    %s169 = sphi 0, %s168
    %s183 = sphi 0, %s169
    %s187 = sphi 0, %s187
    %s189 = sphi 0, %s187
    %s190 = sphi 0, %s189
    %s204 = sphi 0, %s190
    %s208 = sphi 0, %s208
    %s210 = sphi 0, %s208
    %s211 = sphi 0, %s210
    %s225 = sphi 0, %s211
    %s229 = sphi 0, %s229
    %s231 = sphi 0, %s229
    %s232 = sphi 0, %s231
    %s246 = sphi 0, %s232
    %s250 = sphi 0, %s250
    %s252 = sphi 0, %s250
    %s253 = sphi 0, %s252
    %s267 = sphi 0, %s253
    %s271 = sphi 0, %s271
    %s273 = sphi 0, %s271
    %s274 = sphi 0, %s273
    %s288 = sphi 0, %s274
    %s292 = sphi 0, %s292
    %s294 = sphi 0, %s292
    %s295 = sphi 0, %s294
    %s309 = sphi 0, %s295
    %s313 = sphi 0, %s313
    %s315 = sphi 0, %s313
    %s316 = sphi 0, %s315
    %s330 = sphi 0, %s316
    %s334 = sphi 0, %s334
    %s336 = sphi 0, %s334
    %s337 = sphi 0, %s336
    %s351 = sphi 0, %s337
    %s355 = sphi 0, %s355
    %s357 = sphi 0, %s355
    %s358 = sphi 0, %s357
    %s372 = sphi 0, %s358
    %s378 = sphi 0, %s380
    %s381 = sphi 0, %s378
    %s382 = sphi 0, %s381
    %s398 = sphi 0, %s382
  $region4: #{esm2_forward.3} parent=0 // loop_header_branch
    %25 = sbr.rel (%p23) target = $region8
  $region5: #{esm2_forward.3} parent=0 // loop_body
    %s27 = ssub.s32 %s22, 1
    %s28 = ssub.s32 %s22, 2
    %s29 = sadd.s32 %s22, 1
    %s30 = ssub.s32 %s22, %s29
    %p31 = scmp.eq.s32.totalorder %s30, 0
    %s33 = sadd.s32 %s32, 1
    %s34 = scalar_select %p31, %s32, %s33
    %p37 = pneg %p31
    %p38 = scmp.eq.s32.totalorder %s22, 1
    %p39 = por %p37, %p38
    %p40 = scmp.ne.s32.totalorder %s32, %s35
    %p41 = scmp.eq.s32.totalorder %s22, 0
    %p42 = por %p40, %p41
    %p43 = scmp.ne.s32.totalorder %s32, %s35
    %p44 = scmp.eq.s32.totalorder %s27, 1
    %p45 = por %p43, %p44
    %p46 = scmp.ne.s32.totalorder %s35, %s36
    %p47 = scmp.eq.s32.totalorder %s27, 0
    %p48 = por %p46, %p47
    %p49 = scmp.ne.s32.totalorder %s35, %s36
    %p50 = scmp.eq.s32.totalorder %s28, 1
    %p51 = por %p49, %p50
    %p53 = scmp.ne.s32.totalorder %s36, %s52
    %p54 = scmp.eq.s32.totalorder %s28, 0
    %p55 = por %p53, %p54
    %s56 = ssub.s32 %s22, %s29
    %p57 = scmp.eq.s32.totalorder %s56, 0
    %s59 = sadd.s32 %s58, 1
    %s60 = scalar_select %p57, %s58, %s59
    %p63 = pneg %p57
    %p64 = scmp.eq.s32.totalorder %s22, 1
    %p65 = por %p63, %p64
    %p66 = scmp.ne.s32.totalorder %s58, %s61
    %p67 = scmp.eq.s32.totalorder %s22, 0
    %p68 = por %p66, %p67
    %p69 = scmp.ne.s32.totalorder %s58, %s61
    %p70 = scmp.eq.s32.totalorder %s27, 1
    %p71 = por %p69, %p70
    %p72 = scmp.ne.s32.totalorder %s61, %s62
    %p73 = scmp.eq.s32.totalorder %s27, 0
    %p74 = por %p72, %p73
    %p75 = scmp.ne.s32.totalorder %s61, %s62
    %p76 = scmp.eq.s32.totalorder %s28, 1
    %p77 = por %p75, %p76
    %p79 = scmp.ne.s32.totalorder %s62, %s78
    %p80 = scmp.eq.s32.totalorder %s28, 0
    %p81 = por %p79, %p80
    %s83 = sadd.s32 %s82, 1
    %p86 = scmp.eq.s32.totalorder %s22, 1
    %p87 = scmp.ne.s32.totalorder %s82, %s84
    %p88 = scmp.eq.s32.totalorder %s22, 0
    %p89 = por %p87, %p88
    %p90 = scmp.ne.s32.totalorder %s82, %s84
    %p91 = scmp.eq.s32.totalorder %s27, 1
    %p92 = por %p90, %p91
    %p93 = scmp.ne.s32.totalorder %s84, %s85
    %p94 = scmp.eq.s32.totalorder %s27, 0
    %p95 = por %p93, %p94
    %p96 = scmp.ne.s32.totalorder %s84, %s85
    %p97 = scmp.eq.s32.totalorder %s28, 1
    %p98 = por %p96, %p97
    %p100 = scmp.ne.s32.totalorder %s85, %s99
    %p101 = scmp.eq.s32.totalorder %s28, 0
    %p102 = por %p100, %p101
    %s104 = sadd.s32 %s103, 1
    %p107 = scmp.eq.s32.totalorder %s22, 1
    %p108 = scmp.ne.s32.totalorder %s103, %s105
    %p109 = scmp.eq.s32.totalorder %s22, 0
    %p110 = por %p108, %p109
    %p111 = scmp.ne.s32.totalorder %s103, %s105
    %p112 = scmp.eq.s32.totalorder %s27, 1
    %p113 = por %p111, %p112
    %p114 = scmp.ne.s32.totalorder %s105, %s106
    %p115 = scmp.eq.s32.totalorder %s27, 0
    %p116 = por %p114, %p115
    %p117 = scmp.ne.s32.totalorder %s105, %s106
    %p118 = scmp.eq.s32.totalorder %s28, 1
    %p119 = por %p117, %p118
    %p121 = scmp.ne.s32.totalorder %s106, %s120
    %p122 = scmp.eq.s32.totalorder %s28, 0
    %p123 = por %p121, %p122
    %s125 = sadd.s32 %s124, 1
    %p128 = scmp.eq.s32.totalorder %s22, 1
    %p129 = scmp.ne.s32.totalorder %s124, %s126
    %p130 = scmp.eq.s32.totalorder %s22, 0
    %p131 = por %p129, %p130
    %p132 = scmp.ne.s32.totalorder %s124, %s126
    %p133 = scmp.eq.s32.totalorder %s27, 1
    %p134 = por %p132, %p133
    %p135 = scmp.ne.s32.totalorder %s126, %s127
    %p136 = scmp.eq.s32.totalorder %s27, 0
    %p137 = por %p135, %p136
    %p138 = scmp.ne.s32.totalorder %s126, %s127
    %p139 = scmp.eq.s32.totalorder %s28, 1
    %p140 = por %p138, %p139
    %p142 = scmp.ne.s32.totalorder %s127, %s141
    %p143 = scmp.eq.s32.totalorder %s28, 0
    %p144 = por %p142, %p143
    %s146 = sadd.s32 %s145, 1
    %p149 = scmp.eq.s32.totalorder %s22, 1
    %p150 = scmp.ne.s32.totalorder %s145, %s147
    %p151 = scmp.eq.s32.totalorder %s22, 0
    %p152 = por %p150, %p151
    %p153 = scmp.ne.s32.totalorder %s145, %s147
    %p154 = scmp.eq.s32.totalorder %s27, 1
    %p155 = por %p153, %p154
    %p156 = scmp.ne.s32.totalorder %s147, %s148
    %p157 = scmp.eq.s32.totalorder %s27, 0
    %p158 = por %p156, %p157
    %p159 = scmp.ne.s32.totalorder %s147, %s148
    %p160 = scmp.eq.s32.totalorder %s28, 1
    %p161 = por %p159, %p160
    %p163 = scmp.ne.s32.totalorder %s148, %s162
    %p164 = scmp.eq.s32.totalorder %s28, 0
    %p165 = por %p163, %p164
    %s167 = sadd.s32 %s166, 1
    %p170 = scmp.eq.s32.totalorder %s22, 1
    %p171 = scmp.ne.s32.totalorder %s166, %s168
    %p172 = scmp.eq.s32.totalorder %s22, 0
    %p173 = por %p171, %p172
    %p174 = scmp.ne.s32.totalorder %s166, %s168
    %p175 = scmp.eq.s32.totalorder %s27, 1
    %p176 = por %p174, %p175
    %p177 = scmp.ne.s32.totalorder %s168, %s169
    %p178 = scmp.eq.s32.totalorder %s27, 0
    %p179 = por %p177, %p178
    %p180 = scmp.ne.s32.totalorder %s168, %s169
    %p181 = scmp.eq.s32.totalorder %s28, 1
    %p182 = por %p180, %p181
    %p184 = scmp.ne.s32.totalorder %s169, %s183
    %p185 = scmp.eq.s32.totalorder %s28, 0
    %p186 = por %p184, %p185
    %s188 = sadd.s32 %s187, 1
    %p191 = scmp.eq.s32.totalorder %s22, 1
    %p192 = scmp.ne.s32.totalorder %s187, %s189
    %p193 = scmp.eq.s32.totalorder %s22, 0
    %p194 = por %p192, %p193
    %p195 = scmp.ne.s32.totalorder %s187, %s189
    %p196 = scmp.eq.s32.totalorder %s27, 1
    %p197 = por %p195, %p196
    %p198 = scmp.ne.s32.totalorder %s189, %s190
    %p199 = scmp.eq.s32.totalorder %s27, 0
    %p200 = por %p198, %p199
    %p201 = scmp.ne.s32.totalorder %s189, %s190
    %p202 = scmp.eq.s32.totalorder %s28, 1
    %p203 = por %p201, %p202
    %p205 = scmp.ne.s32.totalorder %s190, %s204
    %p206 = scmp.eq.s32.totalorder %s28, 0
    %p207 = por %p205, %p206
    %s209 = sadd.s32 %s208, 1
    %p212 = scmp.eq.s32.totalorder %s22, 1
    %p213 = scmp.ne.s32.totalorder %s208, %s210
    %p214 = scmp.eq.s32.totalorder %s22, 0
    %p215 = por %p213, %p214
    %p216 = scmp.ne.s32.totalorder %s208, %s210
    %p217 = scmp.eq.s32.totalorder %s27, 1
    %p218 = por %p216, %p217
    %p219 = scmp.ne.s32.totalorder %s210, %s211
    %p220 = scmp.eq.s32.totalorder %s27, 0
    %p221 = por %p219, %p220
    %p222 = scmp.ne.s32.totalorder %s210, %s211
    %p223 = scmp.eq.s32.totalorder %s28, 1
    %p224 = por %p222, %p223
    %p226 = scmp.ne.s32.totalorder %s211, %s225
    %p227 = scmp.eq.s32.totalorder %s28, 0
    %p228 = por %p226, %p227
    %s230 = sadd.s32 %s229, 1
    %p233 = scmp.eq.s32.totalorder %s22, 1
    %p234 = scmp.ne.s32.totalorder %s229, %s231
    %p235 = scmp.eq.s32.totalorder %s22, 0
    %p236 = por %p234, %p235
    %p237 = scmp.ne.s32.totalorder %s229, %s231
    %p238 = scmp.eq.s32.totalorder %s27, 1
    %p239 = por %p237, %p238
    %p240 = scmp.ne.s32.totalorder %s231, %s232
    %p241 = scmp.eq.s32.totalorder %s27, 0
    %p242 = por %p240, %p241
    %p243 = scmp.ne.s32.totalorder %s231, %s232
    %p244 = scmp.eq.s32.totalorder %s28, 1
    %p245 = por %p243, %p244
    %p247 = scmp.ne.s32.totalorder %s232, %s246
    %p248 = scmp.eq.s32.totalorder %s28, 0
    %p249 = por %p247, %p248
    %s251 = sadd.s32 %s250, 1
    %p254 = scmp.eq.s32.totalorder %s22, 1
    %p255 = scmp.ne.s32.totalorder %s250, %s252
    %p256 = scmp.eq.s32.totalorder %s22, 0
    %p257 = por %p255, %p256
    %p258 = scmp.ne.s32.totalorder %s250, %s252
    %p259 = scmp.eq.s32.totalorder %s27, 1
    %p260 = por %p258, %p259
    %p261 = scmp.ne.s32.totalorder %s252, %s253
    %p262 = scmp.eq.s32.totalorder %s27, 0
    %p263 = por %p261, %p262
    %p264 = scmp.ne.s32.totalorder %s252, %s253
    %p265 = scmp.eq.s32.totalorder %s28, 1
    %p266 = por %p264, %p265
    %p268 = scmp.ne.s32.totalorder %s253, %s267
    %p269 = scmp.eq.s32.totalorder %s28, 0
    %p270 = por %p268, %p269
    %s272 = sadd.s32 %s271, 1
    %p275 = scmp.eq.s32.totalorder %s22, 1
    %p276 = scmp.ne.s32.totalorder %s271, %s273
    %p277 = scmp.eq.s32.totalorder %s22, 0
    %p278 = por %p276, %p277
    %p279 = scmp.ne.s32.totalorder %s271, %s273
    %p280 = scmp.eq.s32.totalorder %s27, 1
    %p281 = por %p279, %p280
    %p282 = scmp.ne.s32.totalorder %s273, %s274
    %p283 = scmp.eq.s32.totalorder %s27, 0
    %p284 = por %p282, %p283
    %p285 = scmp.ne.s32.totalorder %s273, %s274
    %p286 = scmp.eq.s32.totalorder %s28, 1
    %p287 = por %p285, %p286
    %p289 = scmp.ne.s32.totalorder %s274, %s288
    %p290 = scmp.eq.s32.totalorder %s28, 0
    %p291 = por %p289, %p290
    %s293 = sadd.s32 %s292, 1
    %p296 = scmp.eq.s32.totalorder %s22, 1
    %p297 = scmp.ne.s32.totalorder %s292, %s294
    %p298 = scmp.eq.s32.totalorder %s22, 0
    %p299 = por %p297, %p298
    %p300 = scmp.ne.s32.totalorder %s292, %s294
    %p301 = scmp.eq.s32.totalorder %s27, 1
    %p302 = por %p300, %p301
    %p303 = scmp.ne.s32.totalorder %s294, %s295
    %p304 = scmp.eq.s32.totalorder %s27, 0
    %p305 = por %p303, %p304
    %p306 = scmp.ne.s32.totalorder %s294, %s295
    %p307 = scmp.eq.s32.totalorder %s28, 1
    %p308 = por %p306, %p307
    %p310 = scmp.ne.s32.totalorder %s295, %s309
    %p311 = scmp.eq.s32.totalorder %s28, 0
    %p312 = por %p310, %p311
    %s314 = sadd.s32 %s313, 1
    %p317 = scmp.eq.s32.totalorder %s22, 1
    %p318 = scmp.ne.s32.totalorder %s313, %s315
    %p319 = scmp.eq.s32.totalorder %s22, 0
    %p320 = por %p318, %p319
    %p321 = scmp.ne.s32.totalorder %s313, %s315
    %p322 = scmp.eq.s32.totalorder %s27, 1
    %p323 = por %p321, %p322
    %p324 = scmp.ne.s32.totalorder %s315, %s316
    %p325 = scmp.eq.s32.totalorder %s27, 0
    %p326 = por %p324, %p325
    %p327 = scmp.ne.s32.totalorder %s315, %s316
    %p328 = scmp.eq.s32.totalorder %s28, 1
    %p329 = por %p327, %p328
    %p331 = scmp.ne.s32.totalorder %s316, %s330
    %p332 = scmp.eq.s32.totalorder %s28, 0
    %p333 = por %p331, %p332
    %s335 = sadd.s32 %s334, 1
    %p338 = scmp.eq.s32.totalorder %s22, 1
    %p339 = scmp.ne.s32.totalorder %s334, %s336
    %p340 = scmp.eq.s32.totalorder %s22, 0
    %p341 = por %p339, %p340
    %p342 = scmp.ne.s32.totalorder %s334, %s336
    %p343 = scmp.eq.s32.totalorder %s27, 1
    %p344 = por %p342, %p343
    %p345 = scmp.ne.s32.totalorder %s336, %s337
    %p346 = scmp.eq.s32.totalorder %s27, 0
    %p347 = por %p345, %p346
    %p348 = scmp.ne.s32.totalorder %s336, %s337
    %p349 = scmp.eq.s32.totalorder %s28, 1
    %p350 = por %p348, %p349
    %p352 = scmp.ne.s32.totalorder %s337, %s351
    %p353 = scmp.eq.s32.totalorder %s28, 0
    %p354 = por %p352, %p353
    %s356 = sadd.s32 %s355, 1
    %p359 = scmp.eq.s32.totalorder %s22, 1
    %p360 = scmp.ne.s32.totalorder %s355, %s357
    %p361 = scmp.eq.s32.totalorder %s22, 0
    %p362 = por %p360, %p361
    %p363 = scmp.ne.s32.totalorder %s355, %s357
    %p364 = scmp.eq.s32.totalorder %s27, 1
    %p365 = por %p363, %p364
    %p366 = scmp.ne.s32.totalorder %s357, %s358
    %p367 = scmp.eq.s32.totalorder %s27, 0
    %p368 = por %p366, %p367
    %p369 = scmp.ne.s32.totalorder %s357, %s358
    %p370 = scmp.eq.s32.totalorder %s28, 1
    %p371 = por %p369, %p370
    %p373 = scmp.ne.s32.totalorder %s358, %s372
    %p374 = scmp.eq.s32.totalorder %s28, 0
    %p375 = por %p373, %p374
    %s376 = ssub.s32 %s22, %s29
    %p377 = scmp.eq.s32.totalorder %s376, 0
    %s379 = sadd.s32 %s378, 1
    %s380 = scalar_select %p377, %s378, %s379
    %p383 = pneg %p377
    %p384 = scmp.eq.s32.totalorder %s22, 1
    %p385 = por %p383, %p384
    %p386 = scmp.ne.s32.totalorder %s378, %s381
    %p387 = scmp.eq.s32.totalorder %s22, 0
    %p388 = por %p386, %p387
    %p389 = scmp.ne.s32.totalorder %s378, %s381
    %p390 = scmp.eq.s32.totalorder %s27, 1
    %p391 = por %p389, %p390
    %p392 = scmp.ne.s32.totalorder %s381, %s382
    %p393 = scmp.eq.s32.totalorder %s27, 0
    %p394 = por %p392, %p393
    %p395 = scmp.ne.s32.totalorder %s381, %s382
    %p396 = scmp.eq.s32.totalorder %s28, 1
    %p397 = por %p395, %p396
    %p399 = scmp.ne.s32.totalorder %s382, %s398
    %p400 = scmp.eq.s32.totalorder %s28, 0
    %p401 = por %p399, %p400
    %p402 = scmp.le.s32.totalorder 1, %s22
    %p403 = scmp.lt.s32.totalorder %s22, 3
    %p404 = pnand %p402, %p403
    %p405 = pneg %p404
    // Predicated region
    $region9: #{esm2_forward.3} parent=5 // pred_check
      _
    $region10: #{esm2_forward.3} parent=5 // pred_check_branch
      %407 = sbr.rel (%p404) target = $region12
    $region11: #{esm2_forward.3} parent=5 // pred_region
      %s408 = ssub.s32 %s22, 1
      // Predicated region
      $region13: #{esm2_forward.3} parent=11 // pred_check
        %p409 = pneg %p95
      $region14: #{esm2_forward.3} parent=11 // pred_check_branch
        %411 = sbr.rel (%p409) target = $region16
      $region15: #{esm2_forward.3} parent=11 // pred_region
        _
      $region16: #{esm2_forward.3} parent=11 // pred_fallthru
        _
      // Predicated region
      $region17: #{esm2_forward.3} parent=11 // pred_check
        %p412 = pneg %p116
      $region18: #{esm2_forward.3} parent=11 // pred_check_branch
        %414 = sbr.rel (%p412) target = $region20
      $region19: #{esm2_forward.3} parent=11 // pred_region
        _
      $region20: #{esm2_forward.3} parent=11 // pred_fallthru
        _
      // Predicated region
      $region21: #{esm2_forward.3} parent=11 // pred_check
        %p415 = pneg %p137
      $region22: #{esm2_forward.3} parent=11 // pred_check_branch
        %417 = sbr.rel (%p415) target = $region24
      $region23: #{esm2_forward.3} parent=11 // pred_region
        _
      $region24: #{esm2_forward.3} parent=11 // pred_fallthru
        _
      // Predicated region
      $region25: #{esm2_forward.3} parent=11 // pred_check
        %p418 = pneg %p158
      $region26: #{esm2_forward.3} parent=11 // pred_check_branch
        %420 = sbr.rel (%p418) target = $region28
      $region27: #{esm2_forward.3} parent=11 // pred_region
        _
      $region28: #{esm2_forward.3} parent=11 // pred_fallthru
        _
      // Predicated region
      $region29: #{esm2_forward.3} parent=11 // pred_check
        %p421 = pneg %p179
      $region30: #{esm2_forward.3} parent=11 // pred_check_branch
        %423 = sbr.rel (%p421) target = $region32
      $region31: #{esm2_forward.3} parent=11 // pred_region
        _
      $region32: #{esm2_forward.3} parent=11 // pred_fallthru
        _
      // Predicated region
      $region33: #{esm2_forward.3} parent=11 // pred_check
        %p424 = pneg %p200
      $region34: #{esm2_forward.3} parent=11 // pred_check_branch
        %426 = sbr.rel (%p424) target = $region36
      $region35: #{esm2_forward.3} parent=11 // pred_region
        _
      $region36: #{esm2_forward.3} parent=11 // pred_fallthru
        _
      // Predicated region
      $region37: #{esm2_forward.3} parent=11 // pred_check
        %p427 = pneg %p221
      $region38: #{esm2_forward.3} parent=11 // pred_check_branch
        %429 = sbr.rel (%p427) target = $region40
      $region39: #{esm2_forward.3} parent=11 // pred_region
        _
      $region40: #{esm2_forward.3} parent=11 // pred_fallthru
        _
      // Predicated region
      $region41: #{esm2_forward.3} parent=11 // pred_check
        %p430 = pneg %p242
      $region42: #{esm2_forward.3} parent=11 // pred_check_branch
        %432 = sbr.rel (%p430) target = $region44
      $region43: #{esm2_forward.3} parent=11 // pred_region
        _
      $region44: #{esm2_forward.3} parent=11 // pred_fallthru
        _
      // Predicated region
      $region45: #{esm2_forward.3} parent=11 // pred_check
        %p433 = pneg %p263
      $region46: #{esm2_forward.3} parent=11 // pred_check_branch
        %435 = sbr.rel (%p433) target = $region48
      $region47: #{esm2_forward.3} parent=11 // pred_region
        _
      $region48: #{esm2_forward.3} parent=11 // pred_fallthru
        _
      // Predicated region
      $region49: #{esm2_forward.3} parent=11 // pred_check
        %p436 = pneg %p284
      $region50: #{esm2_forward.3} parent=11 // pred_check_branch
        %438 = sbr.rel (%p436) target = $region52
      $region51: #{esm2_forward.3} parent=11 // pred_region
        _
      $region52: #{esm2_forward.3} parent=11 // pred_fallthru
        _
      // Predicated region
      $region53: #{esm2_forward.3} parent=11 // pred_check
        %p439 = pneg %p305
      $region54: #{esm2_forward.3} parent=11 // pred_check_branch
        %441 = sbr.rel (%p439) target = $region56
      $region55: #{esm2_forward.3} parent=11 // pred_region
        _
      $region56: #{esm2_forward.3} parent=11 // pred_fallthru
        _
      // Predicated region
      $region57: #{esm2_forward.3} parent=11 // pred_check
        %p442 = pneg %p326
      $region58: #{esm2_forward.3} parent=11 // pred_check_branch
        %444 = sbr.rel (%p442) target = $region60
      $region59: #{esm2_forward.3} parent=11 // pred_region
        _
      $region60: #{esm2_forward.3} parent=11 // pred_fallthru
        _
      // Predicated region
      $region61: #{esm2_forward.3} parent=11 // pred_check
        %p445 = pneg %p347
      $region62: #{esm2_forward.3} parent=11 // pred_check_branch
        %447 = sbr.rel (%p445) target = $region64
      $region63: #{esm2_forward.3} parent=11 // pred_region
        _
      $region64: #{esm2_forward.3} parent=11 // pred_fallthru
        _
      // Predicated region
      $region65: #{esm2_forward.3} parent=11 // pred_check
        %p448 = pneg %p368
      $region66: #{esm2_forward.3} parent=11 // pred_check_branch
        %450 = sbr.rel (%p448) target = $region68
      $region67: #{esm2_forward.3} parent=11 // pred_region
        _
      $region68: #{esm2_forward.3} parent=11 // pred_fallthru
        _
    $region12: #{esm2_forward.3} parent=5 // pred_fallthru
      _
    %p451 = scmp.lt.s32.totalorder %s22, 2
    // Predicated region
    $region69: #{esm2_forward.3} parent=5 // pred_check
      %p452 = pneg %p451
    $region70: #{esm2_forward.3} parent=5 // pred_check_branch
      %454 = sbr.rel (%p452) target = $region72
    $region71: #{esm2_forward.3} parent=5 // pred_region
      // Predicated region
      $region73: #{esm2_forward.3} parent=71 // pred_check
        %p455 = pneg %p42
      $region74: #{esm2_forward.3} parent=71 // pred_check_branch
        %457 = sbr.rel (%p455) target = $region76
      $region75: #{esm2_forward.3} parent=71 // pred_region
        %p458 = scmp.lt.s32.totalorder %s22, 1
        %s459 = scalar_select %p458, %s22, 1
        %s460 = smul.addr %s459, 8
        %s461 = scalar_lea.vmem %s0, %s460
      $region76: #{esm2_forward.3} parent=71 // pred_fallthru
        _
      // Predicated region
      $region77: #{esm2_forward.3} parent=71 // pred_check
        %p462 = pneg %p68
      $region78: #{esm2_forward.3} parent=71 // pred_check_branch
        %464 = sbr.rel (%p462) target = $region80
      $region79: #{esm2_forward.3} parent=71 // pred_region
        %p465 = scmp.lt.s32.totalorder %s22, 1
        %s466 = scalar_select %p465, %s22, 1
        %s467 = scalar_lea.vmem %s1, %s466
      $region80: #{esm2_forward.3} parent=71 // pred_fallthru
        _
    $region72: #{esm2_forward.3} parent=5 // pred_fallthru
      _
    %p468 = scmp.le.s32.totalorder 1, %s22
    %p469 = scmp.lt.s32.totalorder %s22, 3
    %p470 = pnand %p468, %p469
    %p471 = pneg %p470
    // Predicated region
    $region81: #{esm2_forward.3} parent=5 // pred_check
      _
    $region82: #{esm2_forward.3} parent=5 // pred_check_branch
      %473 = sbr.rel (%p470) target = $region84
    $region83: #{esm2_forward.3} parent=5 // pred_region
      %s474 = ssub.s32 %s22, 1
      %p475 = scmp.lt.s32.totalorder %s27, 1
      %s476 = scalar_select %p475, %s27, 1
      %s477 = smul.addr %s476, 8
      %s478 = scalar_lea.vmem %s0, %s477
      %p479 = pneg %p48
      %p480 = pneg %p45
      %p481 = scmp.lt.s32.totalorder %s27, 1
      %s482 = scalar_select %p481, %s27, 1
      %s483 = scalar_lea.vmem %s1, %s482
      %p484 = pneg %p74
      %p485 = pneg %p71
      %p486 = pneg %p95
      %p487 = pneg %p92
      %p488 = pneg %p116
      %p489 = pneg %p113
      %p490 = pneg %p137
      %p491 = pneg %p134
      %p492 = pneg %p158
      %p493 = pneg %p155
      %p494 = pneg %p179
      %p495 = pneg %p176
      %p496 = pneg %p200
      %p497 = pneg %p197
      %p498 = pneg %p221
      %p499 = pneg %p218
      %p500 = pneg %p242
      %p501 = pneg %p239
      %p502 = pneg %p263
      %p503 = pneg %p260
      %p504 = pneg %p284
      %p505 = pneg %p281
      %p506 = pneg %p305
      %p507 = pneg %p302
      %p508 = pneg %p326
      %p509 = pneg %p323
      %p510 = pneg %p347
      %p511 = pneg %p344
      %p512 = pneg %p368
      %p513 = pneg %p365
      %p514 = pneg %p394
      %p515 = pneg %p391
      %p516 = scmp.lt.s32.totalorder %s27, 1
      %s517 = scalar_select %p516, %s27, 1
      %s518 = smul.addr %s517, 8
      %s519 = scalar_lea.vmem %s16, %s518
      %p520 = scmp.lt.s32.totalorder %s27, 1
      %s521 = scalar_select %p520, %s27, 1
      %s522 = smul.addr %s521, 8
      %s523 = scalar_lea.vmem %s0, %s522
      %p524 = scmp.lt.s32.totalorder %s27, 1
      %s525 = scalar_select %p524, %s27, 1
      %s526 = scalar_lea.vmem %s1, %s525
      %p527 = scmp.lt.s32.totalorder %s27, 1
      %s528 = scalar_select %p527, %s27, 1
      %s529 = smul.addr %s528, 8
      %s530 = scalar_lea.vmem %s16, %s529
      %v532 = vld [vmem:[%s523] sm:$0xff]
      %v533 = vld [vmem:[%s4] sm:$0x1]
      %v534 = vld [vmem:[%s5] sm:$0x1]
      %vm535 = vcmask 261120
      %v536 = vsel %vm535, %v532, 0.0
      %537 = vadd.xlane.f32.xlu0 %v536
      %v538 = vpop.xlane.xlu0 %537
      %v539 = vrcp.pop 32.0
      %v540 = vmul.f32 32.0, %v539
      %v541 = vsub.f32 1.0, %v540
      %v542 = vmul.f32 %v539, %v541
      %v543 = vadd.f32 %v539, %v542
      %vm544 = vweird.f32 %v539
      %v545 = vsel %vm544, %v539, %v543
      %v546 = vmul.f32 %v538, %v545
      %v547 = vsub.f32 %v532, %v546
      %v548 = vmul.f32 %v547, %v547
      %v549 = vsel %vm535, %v548, 0.0
      %550 = vadd.xlane.f32.xlu0 %v549
      %v551 = vpop.xlane.xlu0 %550
      %v552 = vmul.f32 %v551, %v545
      %v553 = vadd.f32 %v552, 1e-05
      %v554 = vrsqrt.pop %v553
      %v555 = vmul.f32 %v554, %v553
      %v556 = vmul.f32 %v555, %v554
      %v557 = vmul.f32 0.5, %v556
      %v558 = vsub.f32 1.5, %v557
      %v559 = vmul.f32 %v554, %v558
      %vm560 = vweird.f32 %v553
      %vm561 = vweird.f32 %v554
      %vm562 = vmor %vm560, %vm561
      %v563 = vsel %vm562, %v554, %v559
      %v564 = vmul.f32 %v547, %v563
      %v566 = vperm.slane %v533, 0
      %v568 = vmul.f32 %v564, %v566
      %v570 = vperm.slane %v534, 0
      %v572 = vadd.f32 %v568, %v570
      %v573 = vpack.c.bf16 %v572, %v572
      %v574 = vld [vmem:[%s6] sm:$0xf]
      %v575 = vld [vmem:[%s6 + $0x4] sm:$0xf]
      %v576 = vld [vmem:[%s6 + $0x8] sm:$0xf]
      %v577 = vld [vmem:[%s6 + $0xc] sm:$0xf]
      %v578 = vld [vmem:[%s7] sm:$0x1]
      %v580 = vperm.slane %v578, 0
      %v586 = vunpack.c.l.b16 %v574
      %v587 = vunpack.c.l.b16 %v575
      %v588 = vunpack.c.l.b16 %v576
      %v589 = vunpack.c.l.b16 %v577
      %v590 = vpack.c.b16 %v587, %v586
      %v591 = vpack.c.b16 %v589, %v588
      %v595 = vsel %vm535, %v573, 0
      %597 = vmatpush.bf16.msra.mxu0 0
      %598 = vmatpush.bf16.msra.mxu0 0
      %599 = vmatpush.bf16.msra.mxu0 0
      %600 = vmatpush.bf16.msra.mxu0 0
      %601 = vmatpush.bf16.msra.mxu0 0
      %602 = vmatpush.bf16.msra.mxu0 0
      %603 = vmatpush.bf16.msra.mxu0 %v591
      %604 = vmatpush.bf16.msra.mxu0 %v590
      %605 = vmatmul.bf16.gmra.mxu0 %v595
      %v606 = vpop.f32.mrf.mxu0
      %v607 = vadd.f32 %v580, %v606
      %v608 = vpop.f32.mrf.mxu0
      %609 = vdwg.mxu0
      %v610 = vld [vmem:[%s2] sm:$0xff]
      %v611 = vld [vmem:[%s3] sm:$0xff]
      %v612 = vld [vmem:[%s526] sm:$0x1]
      %614 = vrot.lane.b32.xlu0 %v607, 124
      %v615 = vpop.permute.xlu0 %614
      %617 = vrot.lane.b32.xlu0 %v607, 4
      %v618 = vpop.permute.xlu0 %617
      %vm620 = vcmask 31744
      %v621 = vsel %vm620, %v615, %v618
      %v622 = vmul.f32 %v607, %v610
      %v623 = vmul.f32 %v621, %v611
      %v624 = vadd.f32 %v622, %v623
      %625 = vrot.lane.b32.xlu0 %v607, 92
      %v626 = vpop.permute.xlu0 %625
      %628 = vrot.lane.b32.xlu0 %v607, 100
      %v629 = vpop.permute.xlu0 %628
      %v631 = vsel %vm620, %v626, %v629
      %633 = vrot.lane.b32.xlu0 %v610, 32
      %v634 = vpop.permute.xlu0 %633
      %v636 = vmul.f32 %v607, %v634
      %v637 = vmul.f32 %v631, %v611
      %639 = vrot.lane.b32.xlu0 %v637, 32
      %v640 = vpop.permute.xlu0 %639
      %v642 = vadd.f32 %v636, %v640
      %v643 = vpack.c.bf16 %v624, %v624
      %v644 = vpack.c.bf16 %v642, %v642
      %v646 = vperm.slane %v612, 0
      %649 = vrot.lane.b32.xlu0 %v644, 96
      %v650 = vpop.permute.xlu0 %649
      %vm651 = vcmask 64512
      %v653 = vsel %vm651, %v643, 0
      %v656 = vsel %vm651, %v650, 0
      %658 = vmatpush.bf16.xpose.msra.mxu0 0
      %659 = vmatpush.bf16.xpose.msra.mxu0 0
      %660 = vmatpush.bf16.xpose.msra.mxu0 0
      %661 = vmatpush.bf16.xpose.msra.mxu0 0
      %662 = vmatpush.bf16.xpose.msra.mxu0 0
      %663 = vmatpush.bf16.xpose.msra.mxu0 0
      %664 = vmatpush.bf16.xpose.msra.mxu0 0
      %665 = vmatpush.bf16.xpose.msra.mxu0 %v656
      %666 = vmatmul.bf16.gmra.mxu0 %v653
      %v667 = vpop.f32.mrf.mxu0
      %v668 = vadd.f32 %v646, %v667
      %v669 = vpop.f32.mrf.mxu0
      %670 = vdwg.mxu0
      %v671 = vsel %vm651, %v668, -inf
      %672 = vmax.xlane.f32.xlu0 %v671
      %v673 = vpop.xlane.xlu0 %672
      %v674 = vsub.f32 %v668, %v673
      %v675 = vmul.f32 %v674, 1.442695
      %v676 = vpow.pop %v675
      %v677 = vsel %vm651, %v676, 0.0
      %678 = vadd.xlane.f32.xlu0 %v677
      %v679 = vpop.xlane.xlu0 %678
      %v680 = vrcp.pop %v679
      %v681 = vmul.f32 %v676, %v680
      %v682 = vpack.c.bf16 %v681, %v681
      %v683 = vpack.c.bf16 %v607, %v607
      %685 = vrot.lane.b32.xlu0 %v683, 64
      %v686 = vpop.permute.xlu0 %685
      %v688 = vsel %vm651, %v682, 0
      %vm690 = vcmask 1043456
      %v692 = vsel %vm690, %v686, 0
      %694 = vmatpush.bf16.msra.mxu0 0
      %695 = vmatpush.bf16.msra.mxu0 0
      %696 = vmatpush.bf16.msra.mxu0 0
      %697 = vmatpush.bf16.msra.mxu0 0
      %698 = vmatpush.bf16.msra.mxu0 0
      %699 = vmatpush.bf16.msra.mxu0 0
      %700 = vmatpush.bf16.msra.mxu0 0
      %701 = vmatpush.bf16.msra.mxu0 %v692
      %702 = vmatmul.bf16.gmra.mxu0 %v688
      %v703 = vpop.f32.mrf.mxu0
      %v704 = vadd.f32 0.0, %v703
      %v705 = vpop.f32.mrf.mxu0
      %706 = vdwg.mxu0
      %707 = vrot.lane.b32.xlu0 %v607, 116
      %v708 = vpop.permute.xlu0 %707
      %v710 = vsel %vm620, %v708, %v615
      %711 = vrot.lane.b32.xlu0 %v610, 8
      %v712 = vpop.permute.xlu0 %711
      %v714 = vmul.f32 %v607, %v712
      %v715 = vmul.f32 %v710, %v611
      %717 = vrot.lane.b32.xlu0 %v715, 8
      %v718 = vpop.permute.xlu0 %717
      %v720 = vadd.f32 %v714, %v718
      %721 = vrot.lane.b32.xlu0 %v607, 84
      %v722 = vpop.permute.xlu0 %721
      %v724 = vsel %vm620, %v722, %v626
      %725 = vrot.lane.b32.xlu0 %v610, 40
      %v726 = vpop.permute.xlu0 %725
      %v728 = vmul.f32 %v607, %v726
      %v729 = vmul.f32 %v724, %v611
      %731 = vrot.lane.b32.xlu0 %v729, 40
      %v732 = vpop.permute.xlu0 %731
      %v734 = vadd.f32 %v728, %v732
      %v735 = vpack.c.bf16 %v720, %v720
      %v736 = vpack.c.bf16 %v734, %v734
      %738 = vrot.lane.b32.xlu0 %v735, 120
      %v739 = vpop.permute.xlu0 %738
      %741 = vrot.lane.b32.xlu0 %v736, 88
      %v742 = vpop.permute.xlu0 %741
      %v744 = vsel %vm651, %v739, 0
      %v747 = vsel %vm651, %v742, 0
      %749 = vmatpush.bf16.xpose.msra.mxu0 0
      %750 = vmatpush.bf16.xpose.msra.mxu0 0
      %751 = vmatpush.bf16.xpose.msra.mxu0 0
      %752 = vmatpush.bf16.xpose.msra.mxu0 0
      %753 = vmatpush.bf16.xpose.msra.mxu0 0
      %754 = vmatpush.bf16.xpose.msra.mxu0 0
      %755 = vmatpush.bf16.xpose.msra.mxu0 0
      %756 = vmatpush.bf16.xpose.msra.mxu0 %v747
      %757 = vmatmul.bf16.gmra.mxu0 %v744
      %v758 = vpop.f32.mrf.mxu0
      %v759 = vadd.f32 %v646, %v758
      %v760 = vpop.f32.mrf.mxu0
      %761 = vdwg.mxu0
      %v762 = vsel %vm651, %v759, -inf
      %763 = vmax.xlane.f32.xlu0 %v762
      %v764 = vpop.xlane.xlu0 %763
      %v765 = vsub.f32 %v759, %v764
      %v766 = vmul.f32 %v765, 1.442695
      %v767 = vpow.pop %v766
      %v768 = vsel %vm651, %v767, 0.0
      %769 = vadd.xlane.f32.xlu0 %v768
      %v770 = vpop.xlane.xlu0 %769
      %v771 = vrcp.pop %v770
      %v772 = vmul.f32 %v767, %v771
      %v773 = vpack.c.bf16 %v772, %v772
      %774 = vrot.lane.b32.xlu0 %v683, 56
      %v775 = vpop.permute.xlu0 %774
      %v777 = vsel %vm651, %v773, 0
      %v780 = vsel %vm690, %v775, 0
      %782 = vmatpush.bf16.msra.mxu0 0
      %783 = vmatpush.bf16.msra.mxu0 0
      %784 = vmatpush.bf16.msra.mxu0 0
      %785 = vmatpush.bf16.msra.mxu0 0
      %786 = vmatpush.bf16.msra.mxu0 0
      %787 = vmatpush.bf16.msra.mxu0 0
      %788 = vmatpush.bf16.msra.mxu0 0
      %789 = vmatpush.bf16.msra.mxu0 %v780
      %790 = vmatmul.bf16.gmra.mxu0 %v777
      %v791 = vpop.f32.mrf.mxu0
      %v792 = vadd.f32 0.0, %v791
      %v793 = vpop.f32.mrf.mxu0
      %794 = vdwg.mxu0
      %795 = vrot.lane.b32.xlu0 %v607, 108
      %v796 = vpop.permute.xlu0 %795
      %v798 = vsel %vm620, %v796, %v708
      %799 = vrot.lane.b32.xlu0 %v610, 16
      %v800 = vpop.permute.xlu0 %799
      %v802 = vmul.f32 %v607, %v800
      %v803 = vmul.f32 %v798, %v611
      %805 = vrot.lane.b32.xlu0 %v803, 16
      %v806 = vpop.permute.xlu0 %805
      %v808 = vadd.f32 %v802, %v806
      %809 = vrot.lane.b32.xlu0 %v607, 76
      %v810 = vpop.permute.xlu0 %809
      %v812 = vsel %vm620, %v810, %v722
      %813 = vrot.lane.b32.xlu0 %v610, 48
      %v814 = vpop.permute.xlu0 %813
      %v816 = vmul.f32 %v607, %v814
      %v817 = vmul.f32 %v812, %v611
      %819 = vrot.lane.b32.xlu0 %v817, 48
      %v820 = vpop.permute.xlu0 %819
      %v822 = vadd.f32 %v816, %v820
      %v823 = vpack.c.bf16 %v808, %v808
      %v824 = vpack.c.bf16 %v822, %v822
      %826 = vrot.lane.b32.xlu0 %v823, 112
      %v827 = vpop.permute.xlu0 %826
      %829 = vrot.lane.b32.xlu0 %v824, 80
      %v830 = vpop.permute.xlu0 %829
      %v832 = vsel %vm651, %v827, 0
      %v835 = vsel %vm651, %v830, 0
      %837 = vmatpush.bf16.xpose.msra.mxu0 0
      %838 = vmatpush.bf16.xpose.msra.mxu0 0
      %839 = vmatpush.bf16.xpose.msra.mxu0 0
      %840 = vmatpush.bf16.xpose.msra.mxu0 0
      %841 = vmatpush.bf16.xpose.msra.mxu0 0
      %842 = vmatpush.bf16.xpose.msra.mxu0 0
      %843 = vmatpush.bf16.xpose.msra.mxu0 0
      %844 = vmatpush.bf16.xpose.msra.mxu0 %v835
      %845 = vmatmul.bf16.gmra.mxu0 %v832
      %v846 = vpop.f32.mrf.mxu0
      %v847 = vadd.f32 %v646, %v846
      %v848 = vpop.f32.mrf.mxu0
      %849 = vdwg.mxu0
      %v850 = vsel %vm651, %v847, -inf
      %851 = vmax.xlane.f32.xlu0 %v850
      %v852 = vpop.xlane.xlu0 %851
      %v853 = vsub.f32 %v847, %v852
      %v854 = vmul.f32 %v853, 1.442695
      %v855 = vpow.pop %v854
      %v856 = vsel %vm651, %v855, 0.0
      %857 = vadd.xlane.f32.xlu0 %v856
      %v858 = vpop.xlane.xlu0 %857
      %v859 = vrcp.pop %v858
      %v860 = vmul.f32 %v855, %v859
      %v861 = vpack.c.bf16 %v860, %v860
      %862 = vrot.lane.b32.xlu0 %v683, 48
      %v863 = vpop.permute.xlu0 %862
      %v865 = vsel %vm651, %v861, 0
      %v868 = vsel %vm690, %v863, 0
      %870 = vmatpush.bf16.msra.mxu0 0
      %871 = vmatpush.bf16.msra.mxu0 0
      %872 = vmatpush.bf16.msra.mxu0 0
      %873 = vmatpush.bf16.msra.mxu0 0
      %874 = vmatpush.bf16.msra.mxu0 0
      %875 = vmatpush.bf16.msra.mxu0 0
      %876 = vmatpush.bf16.msra.mxu0 0
      %877 = vmatpush.bf16.msra.mxu0 %v868
      %878 = vmatmul.bf16.gmra.mxu0 %v865
      %v879 = vpop.f32.mrf.mxu0
      %v880 = vadd.f32 0.0, %v879
      %v881 = vpop.f32.mrf.mxu0
      %882 = vdwg.mxu0
      %v883 = vsel %vm620, %v629, %v796
      %884 = vrot.lane.b32.xlu0 %v610, 24
      %v885 = vpop.permute.xlu0 %884
      %v887 = vmul.f32 %v607, %v885
      %v888 = vmul.f32 %v883, %v611
      %890 = vrot.lane.b32.xlu0 %v888, 24
      %v891 = vpop.permute.xlu0 %890
      %v893 = vadd.f32 %v887, %v891
      %894 = vrot.lane.b32.xlu0 %v607, 68
      %v895 = vpop.permute.xlu0 %894
      %v897 = vsel %vm620, %v895, %v810
      %898 = vrot.lane.b32.xlu0 %v610, 56
      %v899 = vpop.permute.xlu0 %898
      %v901 = vmul.f32 %v607, %v899
      %v902 = vmul.f32 %v897, %v611
      %904 = vrot.lane.b32.xlu0 %v902, 56
      %v905 = vpop.permute.xlu0 %904
      %v907 = vadd.f32 %v901, %v905
      %v908 = vpack.c.bf16 %v893, %v893
      %v909 = vpack.c.bf16 %v907, %v907
      %911 = vrot.lane.b32.xlu0 %v908, 104
      %v912 = vpop.permute.xlu0 %911
      %914 = vrot.lane.b32.xlu0 %v909, 72
      %v915 = vpop.permute.xlu0 %914
      %v917 = vsel %vm651, %v912, 0
      %v920 = vsel %vm651, %v915, 0
      %922 = vmatpush.bf16.xpose.msra.mxu0 0
      %923 = vmatpush.bf16.xpose.msra.mxu0 0
      %924 = vmatpush.bf16.xpose.msra.mxu0 0
      %925 = vmatpush.bf16.xpose.msra.mxu0 0
      %926 = vmatpush.bf16.xpose.msra.mxu0 0
      %927 = vmatpush.bf16.xpose.msra.mxu0 0
      %928 = vmatpush.bf16.xpose.msra.mxu0 0
      %929 = vmatpush.bf16.xpose.msra.mxu0 %v920
      %930 = vmatmul.bf16.gmra.mxu0 %v917
      %v931 = vpop.f32.mrf.mxu0
      %v932 = vadd.f32 %v646, %v931
      %v933 = vpop.f32.mrf.mxu0
      %934 = vdwg.mxu0
      %v935 = vsel %vm651, %v932, -inf
      %936 = vmax.xlane.f32.xlu0 %v935
      %v937 = vpop.xlane.xlu0 %936
      %v938 = vsub.f32 %v932, %v937
      %v939 = vmul.f32 %v938, 1.442695
      %v940 = vpow.pop %v939
      %v941 = vsel %vm651, %v940, 0.0
      %942 = vadd.xlane.f32.xlu0 %v941
      %v943 = vpop.xlane.xlu0 %942
      %v944 = vrcp.pop %v943
      %v945 = vmul.f32 %v940, %v944
      %v946 = vpack.c.bf16 %v945, %v945
      %947 = vrot.lane.b32.xlu0 %v683, 40
      %v948 = vpop.permute.xlu0 %947
      %v950 = vsel %vm651, %v946, 0
      %v953 = vsel %vm690, %v948, 0
      %955 = vmatpush.bf16.msra.mxu0 0
      %956 = vmatpush.bf16.msra.mxu0 0
      %957 = vmatpush.bf16.msra.mxu0 0
      %958 = vmatpush.bf16.msra.mxu0 0
      %959 = vmatpush.bf16.msra.mxu0 0
      %960 = vmatpush.bf16.msra.mxu0 0
      %961 = vmatpush.bf16.msra.mxu0 0
      %962 = vmatpush.bf16.msra.mxu0 %v953
      %963 = vmatmul.bf16.gmra.mxu0 %v950
      %v964 = vpop.f32.mrf.mxu0
      %v965 = vadd.f32 0.0, %v964
      %v966 = vpop.f32.mrf.mxu0
      %967 = vdwg.mxu0
      %969 = vrot.lane.b32.xlu0 %v792, 8
      %v970 = vpop.permute.xlu0 %969
      %973 = vrot.lane.b32.xlu0 %v880, 16
      %v974 = vpop.permute.xlu0 %973
      %977 = vrot.lane.b32.xlu0 %v965, 24
      %v978 = vpop.permute.xlu0 %977
      %v980 = vsel %vm651, %v704, %v970
      %vm981 = vcmask 130048
      %v982 = vsel %vm981, %v980, %v974
      %vm983 = vcmask 195584
      %v984 = vsel %vm983, %v982, %v978
      %v985 = vpack.c.bf16 %v984, %v984
      %v986 = vld [vmem:[%s8] sm:$0xf]
      %v987 = vld [vmem:[%s8 + $0x4] sm:$0xf]
      %v988 = vld [vmem:[%s8 + $0x8] sm:$0xf]
      %v989 = vld [vmem:[%s8 + $0xc] sm:$0xf]
      %v990 = vld [vmem:[%s9] sm:$0x1]
      %v992 = vperm.slane %v990, 0
      %v998 = vunpack.c.l.b16 %v986
      %v999 = vunpack.c.l.b16 %v987
      %v1000 = vunpack.c.l.b16 %v988
      %v1001 = vunpack.c.l.b16 %v989
      %v1002 = vpack.c.b16 %v999, %v998
      %v1003 = vpack.c.b16 %v1001, %v1000
      %v1007 = vsel %vm535, %v985, 0
      %1009 = vmatpush.bf16.msra.mxu0 0
      %1010 = vmatpush.bf16.msra.mxu0 0
      %1011 = vmatpush.bf16.msra.mxu0 0
      %1012 = vmatpush.bf16.msra.mxu0 0
      %1013 = vmatpush.bf16.msra.mxu0 0
      %1014 = vmatpush.bf16.msra.mxu0 0
      %1015 = vmatpush.bf16.msra.mxu0 %v1003
      %1016 = vmatpush.bf16.msra.mxu0 %v1002
      %1017 = vmatmul.bf16.gmra.mxu0 %v1007
      %v1018 = vpop.f32.mrf.mxu0
      %v1019 = vadd.f32 %v992, %v1018
      %v1020 = vpop.f32.mrf.mxu0
      %1021 = vdwg.mxu0
      %v1022 = vadd.f32 %v532, %v1019
      %v1023 = vld [vmem:[%s10] sm:$0x1]
      %v1024 = vld [vmem:[%s11] sm:$0x1]
      %v1025 = vsel %vm535, %v1022, 0.0
      %1026 = vadd.xlane.f32.xlu0 %v1025
      %v1027 = vpop.xlane.xlu0 %1026
      %v1028 = vmul.f32 %v1027, %v545
      %v1029 = vsub.f32 %v1022, %v1028
      %v1030 = vmul.f32 %v1029, %v1029
      %v1031 = vsel %vm535, %v1030, 0.0
      %1032 = vadd.xlane.f32.xlu0 %v1031
      %v1033 = vpop.xlane.xlu0 %1032
      %v1034 = vmul.f32 %v1033, %v545
      %v1035 = vadd.f32 %v1034, 1e-05
      %v1036 = vrsqrt.pop %v1035
      %v1037 = vmul.f32 %v1036, %v1035
      %v1038 = vmul.f32 %v1037, %v1036
      %v1039 = vmul.f32 0.5, %v1038
      %v1040 = vsub.f32 1.5, %v1039
      %v1041 = vmul.f32 %v1036, %v1040
      %vm1042 = vweird.f32 %v1035
      %vm1043 = vweird.f32 %v1036
      %vm1044 = vmor %vm1042, %vm1043
      %v1045 = vsel %vm1044, %v1036, %v1041
      %v1046 = vmul.f32 %v1029, %v1045
      %v1048 = vperm.slane %v1023, 0
      %v1050 = vmul.f32 %v1046, %v1048
      %v1052 = vperm.slane %v1024, 0
      %v1054 = vadd.f32 %v1050, %v1052
      %v1055 = vpack.c.bf16 %v1054, %v1054
      %v1056 = vld [vmem:[%s12] sm:$0xf]
      %v1057 = vld [vmem:[%s12 + $0x4] sm:$0xf]
      %v1058 = vld [vmem:[%s12 + $0x8] sm:$0xf]
      %v1059 = vld [vmem:[%s12 + $0xc] sm:$0xf]
      %v1060 = vld [vmem:[%s13] sm:$0x1]
      %v1062 = vperm.slane %v1060, 0
      %v1068 = vunpack.c.l.b16 %v1056
      %v1069 = vunpack.c.l.b16 %v1057
      %v1070 = vunpack.c.l.b16 %v1058
      %v1071 = vunpack.c.l.b16 %v1059
      %v1072 = vpack.c.b16 %v1069, %v1068
      %v1073 = vpack.c.b16 %v1071, %v1070
      %v1077 = vsel %vm535, %v1055, 0
      %1079 = vmatpush.bf16.msra.mxu0 0
      %1080 = vmatpush.bf16.msra.mxu0 0
      %1081 = vmatpush.bf16.msra.mxu0 0
      %1082 = vmatpush.bf16.msra.mxu0 0
      %1083 = vmatpush.bf16.msra.mxu0 0
      %1084 = vmatpush.bf16.msra.mxu0 0
      %1085 = vmatpush.bf16.msra.mxu0 %v1073
      %1086 = vmatpush.bf16.msra.mxu0 %v1072
      %1087 = vmatmul.bf16.gmra.mxu0 %v1077
      %v1088 = vpop.f32.mrf.mxu0
      %v1089 = vadd.f32 %v1062, %v1088
      %v1090 = vpop.f32.mrf.mxu0
      %1091 = vdwg.mxu0
      %v1092 = vmul.f32 %v1089, 0.5
      %v1093 = vmul.f32 %v1089, 0.70710677
      %v1094 = vmul.f32 %v1093, %v1093
      %v1095 = vmin.f32 16.0, %v1094
      %v1096 = vmul.f32 %v1095, 2.1237322e-06
      %v1097 = vadd.f32 %v1096, 0.00028619796
      %v1098 = vmul.f32 %v1095, %v1097
      %v1099 = vadd.f32 %v1098, 0.0036580483
      %v1100 = vmul.f32 %v1095, %v1099
      %v1101 = vadd.f32 %v1100, 0.05243302
      %v1102 = vmul.f32 %v1095, %v1101
      %v1103 = vadd.f32 %v1102, 0.18741608
      %v1104 = vmul.f32 %v1095, %v1103
      %v1105 = vadd.f32 %v1104, 1.1283791
      %v1106 = vmul.f32 %v1093, %v1105
      %v1107 = vmul.f32 %v1095, 3.8918573e-05
      %v1108 = vadd.f32 %v1107, 0.001143296
      %v1109 = vmul.f32 %v1095, %v1108
      %v1110 = vadd.f32 %v1109, 0.014752088
      %v1111 = vmul.f32 %v1095, %v1110
      %v1112 = vadd.f32 %v1111, 0.112945676
      %v1113 = vmul.f32 %v1095, %v1112
      %v1114 = vadd.f32 %v1113, 0.4994258
      %v1115 = vmul.f32 %v1095, %v1114
      %v1116 = vadd.f32 %v1115, 1.0
      %v1117 = vrcp.pop %v1116
      %v1118 = vmul.f32 %v1116, %v1117
      %v1119 = vsub.f32 1.0, %v1118
      %v1120 = vmul.f32 %v1117, %v1119
      %v1121 = vadd.f32 %v1117, %v1120
      %vm1122 = vweird.f32 %v1116
      %vm1123 = vweird.f32 %v1117
      %vm1124 = vmor %vm1122, %vm1123
      %v1125 = vsel %vm1124, %v1117, %v1121
      %v1126 = vand.u32 2147483647, %v1116
      %vm1127 = vcmp.eq.f32.partialorder %v1126, 8.507059e+37
      %v1128 = vand.u32 %v1116, 2147483648
      %v1129 = vor.u32 1.1754944e-38, %v1128
      %v1130 = vsel %vm1127, %v1129, %v1125
      %v1131 = vmul.f32 %v1106, %v1130
      %v1132 = vmin.f32 %v1131, 1.0
      %v1133 = vmax.f32 %v1132, -1.0
      %v1134 = vadd.f32 %v1133, 1.0
      %v1135 = vmul.f32 %v1092, %v1134
      %v1136 = vpack.c.bf16 %v1135, %v1135
      %v1137 = vld [vmem:[%s14] sm:$0xf]
      %v1138 = vld [vmem:[%s14 + $0x4] sm:$0xf]
      %v1139 = vld [vmem:[%s14 + $0x8] sm:$0xf]
      %v1140 = vld [vmem:[%s14 + $0xc] sm:$0xf]
      %v1141 = vld [vmem:[%s14 + $0x10] sm:$0xf]
      %v1142 = vld [vmem:[%s14 + $0x14] sm:$0xf]
      %v1143 = vld [vmem:[%s14 + $0x18] sm:$0xf]
      %v1144 = vld [vmem:[%s14 + $0x1c] sm:$0xf]
      %v1145 = vld [vmem:[%s14 + $0x20] sm:$0xf]
      %v1146 = vld [vmem:[%s14 + $0x24] sm:$0xf]
      %v1147 = vld [vmem:[%s14 + $0x28] sm:$0xf]
      %v1148 = vld [vmem:[%s14 + $0x2c] sm:$0xf]
      %v1149 = vld [vmem:[%s14 + $0x30] sm:$0xf]
      %v1150 = vld [vmem:[%s14 + $0x34] sm:$0xf]
      %v1151 = vld [vmem:[%s14 + $0x38] sm:$0xf]
      %v1152 = vld [vmem:[%s14 + $0x3c] sm:$0xf]
      %v1153 = vld [vmem:[%s15] sm:$0x1]
      %v1155 = vperm.slane %v1153, 0
      %v1173 = vunpack.c.l.b16 %v1137
      %v1174 = vunpack.c.l.b16 %v1138
      %v1175 = vunpack.c.l.b16 %v1139
      %v1176 = vunpack.c.l.b16 %v1140
      %v1177 = vunpack.c.l.b16 %v1141
      %v1178 = vunpack.c.l.b16 %v1142
      %v1179 = vunpack.c.l.b16 %v1143
      %v1180 = vunpack.c.l.b16 %v1144
      %v1181 = vunpack.c.l.b16 %v1145
      %v1182 = vunpack.c.l.b16 %v1146
      %v1183 = vunpack.c.l.b16 %v1147
      %v1184 = vunpack.c.l.b16 %v1148
      %v1185 = vunpack.c.l.b16 %v1149
      %v1186 = vunpack.c.l.b16 %v1150
      %v1187 = vunpack.c.l.b16 %v1151
      %v1188 = vunpack.c.l.b16 %v1152
      %v1189 = vpack.c.b16 %v1174, %v1173
      %v1190 = vpack.c.b16 %v1176, %v1175
      %v1191 = vpack.c.b16 %v1178, %v1177
      %v1192 = vpack.c.b16 %v1180, %v1179
      %v1193 = vpack.c.b16 %v1182, %v1181
      %v1194 = vpack.c.b16 %v1184, %v1183
      %v1195 = vpack.c.b16 %v1186, %v1185
      %v1196 = vpack.c.b16 %v1188, %v1187
      %1205 = vmatpush.bf16.msra.mxu0 %v1196
      %1206 = vmatpush.bf16.msra.mxu0 %v1195
      %1207 = vmatpush.bf16.msra.mxu0 %v1194
      %1208 = vmatpush.bf16.msra.mxu0 %v1193
      %1209 = vmatpush.bf16.msra.mxu0 %v1192
      %1210 = vmatpush.bf16.msra.mxu0 %v1191
      %1211 = vmatpush.bf16.msra.mxu0 %v1190
      %1212 = vmatpush.bf16.msra.mxu0 %v1189
      %1213 = vmatmul.bf16.gmra.mxu0 %v1136
      %v1214 = vpop.f32.mrf.mxu0
      %v1215 = vadd.f32 %v1155, %v1214
      %v1216 = vpop.f32.mrf.mxu0
      %1217 = vdwg.mxu0
      %v1218 = vadd.f32 %v1022, %v1215
      %1219 = vst.msk [vmem:[%s530] sm:$0xff] %vm535, %v1218
      %p1220 = scmp.lt.s32.totalorder %s27, 1
      %s1221 = scalar_select %p1220, %s27, 1
      %s1222 = smul.addr %s1221, 8
      %s1223 = scalar_lea.vmem %s16, %s1222
      // Predicated region
      $region85: #{esm2_forward.3} parent=83 // pred_check
        %p1224 = pneg %p391
      $region86: #{esm2_forward.3} parent=83 // pred_check_branch
        %1226 = sbr.rel (%p1224) target = $region88
      $region87: #{esm2_forward.3} parent=83 // pred_region
        _
      $region88: #{esm2_forward.3} parent=83 // pred_fallthru
        _
    $region84: #{esm2_forward.3} parent=5 // pred_fallthru
      _
    %p1227 = scmp.le.s32.totalorder 2, %s22
    // Predicated region
    $region89: #{esm2_forward.3} parent=5 // pred_check
      %p1228 = pneg %p1227
    $region90: #{esm2_forward.3} parent=5 // pred_check_branch
      %1230 = sbr.rel (%p1228) target = $region92
    $region91: #{esm2_forward.3} parent=5 // pred_region
      %s1231 = ssub.s32 %s22, 2
      // Predicated region
      $region93: #{esm2_forward.3} parent=91 // pred_check
        %p1232 = pneg %p397
      $region94: #{esm2_forward.3} parent=91 // pred_check_branch
        %1234 = sbr.rel (%p1232) target = $region96
      $region95: #{esm2_forward.3} parent=91 // pred_region
        %p1235 = scmp.lt.s32.totalorder %s28, 1
        %s1236 = scalar_select %p1235, %s28, 1
        %s1237 = smul.addr %s1236, 8
        %s1238 = scalar_lea.vmem %s16, %s1237
      $region96: #{esm2_forward.3} parent=91 // pred_fallthru
        _
    $region92: #{esm2_forward.3} parent=5 // pred_fallthru
      _
  $region6: #{esm2_forward.3} parent=0 // loop_footer
    %s26 = sadd.s32 1, %s22
  $region7: #{esm2_forward.3} parent=0 // loop_footer_branch
    %21 = sbr.rel target = $region3
  $region8: #{esm2_forward.3} parent=0 // loop_exit
    _

</llo_original>
